<compile_context>
chip_gen: v5e
topology: v5e:2x2
jax: 0.10.0
libtpu: 0.0.40
codegen_flags: <defaults>
</compile_context>

<pallas_src>
import functools

import jax
import jax.numpy as jnp
from jax.experimental import pallas as pl
from jax.experimental.pallas import tpu as pltpu

_LANE = 128


def _round_up(x, m):
    return ((x + m - 1) // m) * m


def _cdiv(a, b):
    return -(-a // b)


def _vmem_capacity_bytes():
    """Per-TensorCore VMEM capacity (64 MiB on v7x, 128 MiB on v5e/v6e)."""
    try:
        return int(pltpu.get_tpu_info().vmem_capacity_bytes)
    except Exception:
        return 64 * 1024 * 1024  # conservative default (v7x per-core)


def _choose_tiling(B, E, E_pad, in_itemsize, vmem_budget):
    """Pick (batch_tile, num_tiles) for the batch grid."""
    # Resident per core: three (E, E_pad) W1 chunks + b1 + w2 (single-buffered).
    resident = 3 * E * E_pad * in_itemsize + 2 * E_pad * 4
    # Per batch row: double-buffered h/r/t tiles + f32 output + f32 z/a temps.
    per_row = 2 * (3 * E * in_itemsize + 4) + 3 * E_pad * 4
    cap = (vmem_budget - resident) // max(per_row, 1)
    cap = max(_LANE, min(4096, (cap // _LANE) * _LANE))
    # v7x has 2 TensorCores: give a "parallel" grid work for both when B is
    # large enough (harmless ~0.35us extra step on single-TC v5e/v6e).
    min_steps = 2 if B >= 2 * _LANE else 1
    if B <= cap and min_steps == 1:
        # Single tile == full array: no (8,128)/(16,128) alignment needed.
        return B, 1
    n = max(min_steps, _cdiv(B, cap))
    tb = min(cap, _round_up(_cdiv(B, n), _LANE))  # multiple of 128 -> bf16-safe
    return tb, _cdiv(B, tb)


def _scoring_kernel(h_ref, r_ref, t_ref, w1h_ref, w1r_ref, w1t_ref,
                    b1_ref, w2_ref, b2_ref, o_ref, *, precision):
    # Layer 1: three accumulating MXU matmuls (== one K=3E matmul), f32 acc.
    z = jnp.dot(h_ref[...], w1h_ref[...],
                preferred_element_type=jnp.float32, precision=precision)
    z += jnp.dot(r_ref[...], w1r_ref[...],
                 preferred_element_type=jnp.float32, precision=precision)
    z += jnp.dot(t_ref[...], w1t_ref[...],
                 preferred_element_type=jnp.float32, precision=precision)
    a = jnp.maximum(z + b1_ref[...], 0.0)                 # [TB, E_pad] f32, VPU
    # Layer 2 (N=1): VPU multiply + lane (XLU) reduction + SMEM scalar bias.
    s = jnp.sum(a * w2_ref[...], axis=-1) + b2_ref[0]     # [TB]
    # Lane-dense store; the sublane->lane relayout of `s` is an XLU op off the
    # DMA/MXU critical path (kept per review note 10).
    o_ref[...] = s[None, :].astype(o_ref.dtype)


def scoring_function(h, r, t, w1, b1, w2, b2, *, use_bf16=False, precision=None):
    """h, r, t: [B, E].  w1: [3E, E] (transpose of torch's [E, 3E] weight),
    b1: [E], w2: [E, 1], b2: [1].  Returns [B, 1] f32 scores."""
    B, E = h.shape
    assert r.shape == (B, E) and t.shape == (B, E)
    assert w1.shape == (3 * E, E) and b1.shape == (E,)
    assert w2.shape == (E, 1) and b2.shape == (1,)

    E_pad = _round_up(E, _LANE)                 # weight N-dim / epilogue lanes
    in_dtype = jnp.bfloat16 if use_bf16 else jnp.float32
    in_itemsize = jnp.dtype(in_dtype).itemsize

    vmem_cap = _vmem_capacity_bytes()           # per TensorCore, not per chip
    TB, n_tiles = _choose_tiling(B, E, E_pad, in_itemsize,
                                 vmem_budget=int(0.65 * vmem_cap))
    vmem_limit = int(0.85 * vmem_cap)

    # Activations: cast only (optionally to bf16); no padding, no concat.
    h_c = h.astype(in_dtype)
    r_c = r.astype(in_dtype)
    t_c = t.astype(in_dtype)

    # Weights: split W1 into its h/r/t chunks, lane-pad only the output dim
    # (padded columns stay zero through relu and are multiplied by zero in w2).
    def pad_n(wc):
        return jnp.pad(wc, ((0, 0), (0, E_pad - E))).astype(in_dtype)

    w1h = pad_n(w1[0 * E:1 * E])
    w1r = pad_n(w1[1 * E:2 * E])
    w1t = pad_n(w1[2 * E:3 * E])
    b1_p = jnp.pad(b1, (0, E_pad - E)).reshape(1, E_pad).astype(jnp.float32)
    w2_p = jnp.pad(w2[:, 0], (0, E_pad - E)).reshape(1, E_pad).astype(jnp.float32)
    b2_p = b2.astype(jnp.float32)               # (1,) scalar -> SMEM

    kernel = functools.partial(_scoring_kernel, precision=precision)

    def _call(single_buffer_weights):
        res_kw = (dict(pipeline_mode=pl.Buffered(1))
                  if single_buffer_weights else {})
        in_specs = [
            pl.BlockSpec((TB, E), lambda i: (i, 0)),               # h  streamed
            pl.BlockSpec((TB, E), lambda i: (i, 0)),               # r  streamed
            pl.BlockSpec((TB, E), lambda i: (i, 0)),               # t  streamed
            pl.BlockSpec((E, E_pad), lambda i: (0, 0), **res_kw),  # W1_h resident
            pl.BlockSpec((E, E_pad), lambda i: (0, 0), **res_kw),  # W1_r resident
            pl.BlockSpec((E, E_pad), lambda i: (0, 0), **res_kw),  # W1_t resident
            pl.BlockSpec((1, E_pad), lambda i: (0, 0), **res_kw),  # b1   resident
            pl.BlockSpec((1, E_pad), lambda i: (0, 0), **res_kw),  # w2   resident
            pl.BlockSpec(memory_space=pltpu.MemorySpace.SMEM),     # b2   scalar
        ]
        return pl.pallas_call(
            kernel,
            out_shape=jax.ShapeDtypeStruct((1, B), jnp.float32),
            grid=(n_tiles,),
            in_specs=in_specs,
            out_specs=pl.BlockSpec((1, TB), lambda i: (0, i)),     # lane-dense
            compiler_params=pltpu.CompilerParams(
                dimension_semantics=("parallel",),
                vmem_limit_bytes=vmem_limit),
        )(h_c, r_c, t_c, w1h, w1r, w1t, b1_p, w2_p, b2_p)

    try:
        out = _call(True)    # single-buffered resident weights (halves VMEM)
    except Exception:
        out = _call(False)   # fallback if pipeline_mode buffering unsupported

    return out.reshape(B, 1)


def nas_model_forward(heads, relations, tails, params, *, use_bf16=False,
                      precision=None):
    """Full NasModel forward: embedding gathers (plain JAX) + Pallas scoring MLP."""
    # TODO(synk): for very large embedding tables, fuse the gather into the
    # kernel via PrefetchScalarGridSpec scalar-prefetched indices + per-row DMA
    # to avoid the XLA gather's HBM round trip.
    h = jnp.take(params["entity_embeddings"], heads, axis=0)
    r = jnp.take(params["relation_embeddings"], relations, axis=0)
    t = jnp.take(params["entity_embeddings"], tails, axis=0)
    return scoring_function(h, r, t, params["w1"], params["b1"],
                            params["w2"], params["b2"],
                            use_bf16=use_bf16, precision=precision)


def init_nas_params(key, num_entities, num_relations, embedding_dim):
    """nn.Embedding ~ N(0,1); nn.Linear ~ U(+-1/sqrt(fan_in))."""
    k_e, k_r, k1, k2, k3, k4 = jax.random.split(key, 6)
    ent = jax.random.normal(k_e, (num_entities, embedding_dim), jnp.float32)
    rel = jax.random.normal(k_r, (num_relations, embedding_dim), jnp.float32)
    fan_in1 = 3 * embedding_dim
    lim1 = 1.0 / jnp.sqrt(jnp.float32(fan_in1))
    w1 = jax.random.uniform(k1, (fan_in1, embedding_dim), jnp.float32, -lim1, lim1)
    b1 = jax.random.uniform(k2, (embedding_dim,), jnp.float32, -lim1, lim1)
    lim2 = 1.0 / jnp.sqrt(jnp.float32(embedding_dim))
    w2 = jax.random.uniform(k3, (embedding_dim, 1), jnp.float32, -lim2, lim2)
    b2 = jax.random.uniform(k4, (1,), jnp.float32, -lim2, lim2)
    return dict(entity_embeddings=ent, relation_embeddings=rel,
                w1=w1, b1=b1, w2=w2, b2=b2)


def _jnp_reference(heads, relations, tails, params, precision):
    h = jnp.take(params["entity_embeddings"], heads, axis=0)
    r = jnp.take(params["relation_embeddings"], relations, axis=0)
    t = jnp.take(params["entity_embeddings"], tails, axis=0)
    x = jnp.concatenate([h, r, t], axis=1)
    act = jnp.maximum(jnp.dot(x, params["w1"], precision=precision) + params["b1"], 0.0)
    return jnp.dot(act, params["w2"], precision=precision) + params["b2"]


if __name__ == "__main__":
    num_entities, num_relations, E, B = 64, 16, 32, 8

    key = jax.random.PRNGKey(0)
    k_param, k_h, k_r, k_t = jax.random.split(key, 4)
    params = init_nas_params(k_param, num_entities, num_relations, E)
    heads = jax.random.randint(k_h, (B,), 0, num_entities, jnp.int32)
    rels = jax.random.randint(k_r, (B,), 0, num_relations, jnp.int32)
    tails = jax.random.randint(k_t, (B,), 0, num_entities, jnp.int32)

    hp = jax.lax.Precision.HIGHEST  # exact-f32 MXU for the correctness check
    out = nas_model_forward(heads, rels, tails, params, precision=hp)
    out = jax.block_until_ready(out)
    ref = _jnp_reference(heads, rels, tails, params, hp)
    assert out.shape == (B, 1)
    assert jnp.allclose(out, ref, atol=1e-5, rtol=1e-5)

    # Larger batch: exercises the multi-tile streamed path (>=2 grid steps for
    # v7x megacore) and the bf16 MXU-operand path recommended for production.
    B2 = 512
    k2h, k2r, k2t = jax.random.split(jax.random.PRNGKey(1), 3)
    heads2 = jax.random.randint(k2h, (B2,), 0, num_entities, jnp.int32)
    rels2 = jax.random.randint(k2r, (B2,), 0, num_relations, jnp.int32)
    tails2 = jax.random.randint(k2t, (B2,), 0, num_entities, jnp.int32)
    out2 = jax.block_until_ready(
        nas_model_forward(heads2, rels2, tails2, params, use_bf16=True))
    ref2 = _jnp_reference(heads2, rels2, tails2, params, hp)
    assert out2.shape == (B2, 1)
    assert jnp.allclose(out2, ref2, atol=1e-1, rtol=1e-1)

    print("KERNEL_OK")
</pallas_src>

<mosaic_0001>
module attributes {stable_mosaic.version = 11 : i64} {
  func.func @_scoring_kernel(%arg0: i32, %arg1: memref<8x32xf32, #tpu.memory_space<vmem>>, %arg2: memref<8x32xf32, #tpu.memory_space<vmem>>, %arg3: memref<8x32xf32, #tpu.memory_space<vmem>>, %arg4: memref<32x128xf32, #tpu.memory_space<vmem>>, %arg5: memref<32x128xf32, #tpu.memory_space<vmem>>, %arg6: memref<32x128xf32, #tpu.memory_space<vmem>>, %arg7: memref<1x128xf32, #tpu.memory_space<vmem>>, %arg8: memref<1x128xf32, #tpu.memory_space<vmem>>, %arg9: memref<1xf32, #tpu.memory_space<smem>>, %arg10: memref<1x8xf32, #tpu.memory_space<vmem>>) attributes {dimension_semantics = [#tpu.dimension_semantics<parallel>], iteration_bounds = array<i64: 1>, scalar_prefetch = 0 : i64, scratch_operands = 0 : i64, tpu.core_type = #tpu.core_type<tc>, window_params = [{transform_indices = @transform_0, window_bounds = array<i64: 8, 32>}, {transform_indices = @transform_1, window_bounds = array<i64: 8, 32>}, {transform_indices = @transform_2, window_bounds = array<i64: 8, 32>}, {pipeline_mode = #tpu.pipeline_mode<synchronous>, transform_indices = @transform_3, window_bounds = array<i64: 32, 128>}, {pipeline_mode = #tpu.pipeline_mode<synchronous>, transform_indices = @transform_4, window_bounds = array<i64: 32, 128>}, {pipeline_mode = #tpu.pipeline_mode<synchronous>, transform_indices = @transform_5, window_bounds = array<i64: 32, 128>}, {pipeline_mode = #tpu.pipeline_mode<synchronous>, transform_indices = @transform_6, window_bounds = array<i64: 1, 128>}, {pipeline_mode = #tpu.pipeline_mode<synchronous>, transform_indices = @transform_7, window_bounds = array<i64: 1, 128>}, {transform_indices = @transform_8, window_bounds = array<i64: 1>}, {transform_indices = @transform_9, window_bounds = array<i64: 1, 8>}]} {
    %c0 = arith.constant 0 : index
    %c0_0 = arith.constant 0 : index
    %0 = vector.load %arg1[%c0, %c0_0] : memref<8x32xf32, #tpu.memory_space<vmem>>, vector<8x32xf32>
    %c0_1 = arith.constant 0 : index
    %c0_2 = arith.constant 0 : index
    %1 = vector.load %arg4[%c0_1, %c0_2] : memref<32x128xf32, #tpu.memory_space<vmem>>, vector<32x128xf32>
    %cst = arith.constant dense<0.000000e+00> : vector<8x128xf32>
    %2 = tpu.matmul %0, %1, %cst {dimension_numbers = #tpu.dot_dimension_numbers<[1], [0], [0], [1], [0, 0, 1, 1], [], []>, precision = #tpu.contract_precision<fp32>} : vector<8x32xf32>, vector<32x128xf32>, vector<8x128xf32> -> vector<8x128xf32>
    %c0_3 = arith.constant 0 : index
    %c0_4 = arith.constant 0 : index
    %3 = vector.load %arg2[%c0_3, %c0_4] : memref<8x32xf32, #tpu.memory_space<vmem>>, vector<8x32xf32>
    %c0_5 = arith.constant 0 : index
    %c0_6 = arith.constant 0 : index
    %4 = vector.load %arg5[%c0_5, %c0_6] : memref<32x128xf32, #tpu.memory_space<vmem>>, vector<32x128xf32>
    %cst_7 = arith.constant dense<0.000000e+00> : vector<8x128xf32>
    %5 = tpu.matmul %3, %4, %cst_7 {dimension_numbers = #tpu.dot_dimension_numbers<[1], [0], [0], [1], [0, 0, 1, 1], [], []>, precision = #tpu.contract_precision<fp32>} : vector<8x32xf32>, vector<32x128xf32>, vector<8x128xf32> -> vector<8x128xf32>
    %6 = arith.addf %2, %5 : vector<8x128xf32>
    %c0_8 = arith.constant 0 : index
    %c0_9 = arith.constant 0 : index
    %7 = vector.load %arg3[%c0_8, %c0_9] : memref<8x32xf32, #tpu.memory_space<vmem>>, vector<8x32xf32>
    %c0_10 = arith.constant 0 : index
    %c0_11 = arith.constant 0 : index
    %8 = vector.load %arg6[%c0_10, %c0_11] : memref<32x128xf32, #tpu.memory_space<vmem>>, vector<32x128xf32>
    %cst_12 = arith.constant dense<0.000000e+00> : vector<8x128xf32>
    %9 = tpu.matmul %7, %8, %cst_12 {dimension_numbers = #tpu.dot_dimension_numbers<[1], [0], [0], [1], [0, 0, 1, 1], [], []>, precision = #tpu.contract_precision<fp32>} : vector<8x32xf32>, vector<32x128xf32>, vector<8x128xf32> -> vector<8x128xf32>
    %10 = arith.addf %6, %9 : vector<8x128xf32>
    %c0_13 = arith.constant 0 : index
    %c0_14 = arith.constant 0 : index
    %11 = vector.load %arg7[%c0_13, %c0_14] : memref<1x128xf32, #tpu.memory_space<vmem>>, vector<1x128xf32>
    %12 = vector.broadcast %11 : vector<1x128xf32> to vector<8x128xf32>
    %13 = arith.addf %10, %12 : vector<8x128xf32>
    %cst_15 = arith.constant 0.000000e+00 : f32
    %14 = vector.broadcast %cst_15 : f32 to vector<8x128xf32>
    %15 = arith.maximumf %13, %14 : vector<8x128xf32>
    %c0_16 = arith.constant 0 : index
    %c0_17 = arith.constant 0 : index
    %16 = vector.load %arg8[%c0_16, %c0_17] : memref<1x128xf32, #tpu.memory_space<vmem>>, vector<1x128xf32>
    %17 = vector.broadcast %16 : vector<1x128xf32> to vector<8x128xf32>
    %18 = arith.mulf %15, %17 : vector<8x128xf32>
    %cst_18 = arith.constant dense<0.000000e+00> : vector<8xf32>
    %19 = vector.multi_reduction <add>, %18, %cst_18 [1] : vector<8x128xf32> to vector<8xf32>
    %c0_19 = arith.constant 0 : index
    %20 = memref.load %arg9[%c0_19] : memref<1xf32, #tpu.memory_space<smem>>
    %21 = vector.broadcast %20 : f32 to vector<8xf32>
    %22 = arith.addf %19, %21 : vector<8xf32>
    %23 = vector.shape_cast %22 : vector<8xf32> to vector<1x8xf32>
    %c0_20 = arith.constant 0 : index
    %c0_21 = arith.constant 0 : index
    %24 = vector.load %arg10[%c0_20, %c0_21] : memref<1x8xf32, #tpu.memory_space<vmem>>, vector<1x8xf32>
    tpu.vector_store %arg10[%c0_20, %c0_21], %23 {strides = array<i32>} : memref<1x8xf32, #tpu.memory_space<vmem>>, vector<1x8xf32>,
    return
  }
  func.func @transform_0(%arg0: i32) -> (i32, i32) {
    %c0_i32 = arith.constant 0 : i32
    %c0_i32_0 = arith.constant 0 : i32
    return %arg0, %c0_i32 : i32, i32
  }
  func.func @transform_1(%arg0: i32) -> (i32, i32) {
    %c0_i32 = arith.constant 0 : i32
    %c0_i32_0 = arith.constant 0 : i32
    return %arg0, %c0_i32 : i32, i32
  }
  func.func @transform_2(%arg0: i32) -> (i32, i32) {
    %c0_i32 = arith.constant 0 : i32
    %c0_i32_0 = arith.constant 0 : i32
    return %arg0, %c0_i32 : i32, i32
  }
  func.func @transform_3(%arg0: i32) -> (i32, i32) {
    %c0_i32 = arith.constant 0 : i32
    %c0_i32_0 = arith.constant 0 : i32
    %c0_i32_1 = arith.constant 0 : i32
    return %c0_i32, %c0_i32_0 : i32, i32
  }
  func.func @transform_4(%arg0: i32) -> (i32, i32) {
    %c0_i32 = arith.constant 0 : i32
    %c0_i32_0 = arith.constant 0 : i32
    %c0_i32_1 = arith.constant 0 : i32
    return %c0_i32, %c0_i32_0 : i32, i32
  }
  func.func @transform_5(%arg0: i32) -> (i32, i32) {
    %c0_i32 = arith.constant 0 : i32
    %c0_i32_0 = arith.constant 0 : i32
    %c0_i32_1 = arith.constant 0 : i32
    return %c0_i32, %c0_i32_0 : i32, i32
  }
  func.func @transform_6(%arg0: i32) -> (i32, i32) {
    %c0_i32 = arith.constant 0 : i32
    %c0_i32_0 = arith.constant 0 : i32
    %c0_i32_1 = arith.constant 0 : i32
    return %c0_i32, %c0_i32_0 : i32, i32
  }
  func.func @transform_7(%arg0: i32) -> (i32, i32) {
    %c0_i32 = arith.constant 0 : i32
    %c0_i32_0 = arith.constant 0 : i32
    %c0_i32_1 = arith.constant 0 : i32
    return %c0_i32, %c0_i32_0 : i32, i32
  }
  func.func @transform_8(%arg0: i32) -> i32 {
    %c0_i32 = arith.constant 0 : i32
    %c0_i32_0 = arith.constant 0 : i32
    return %c0_i32 : i32
  }
  func.func @transform_9(%arg0: i32) -> (i32, i32) {
    %c0_i32 = arith.constant 0 : i32
    %c0_i32_0 = arith.constant 0 : i32
    return %c0_i32, %arg0 : i32, i32
  }
}

module attributes {stable_mosaic.version = 11 : i64} {
  func.func @_scoring_kernel(%arg0: i32, %arg1: memref<8x32xf32, #tpu.memory_space<vmem>>, %arg2: memref<8x32xf32, #tpu.memory_space<vmem>>, %arg3: memref<8x32xf32, #tpu.memory_space<vmem>>, %arg4: memref<32x128xf32, #tpu.memory_space<vmem>>, %arg5: memref<32x128xf32, #tpu.memory_space<vmem>>, %arg6: memref<32x128xf32, #tpu.memory_space<vmem>>, %arg7: memref<1x128xf32, #tpu.memory_space<vmem>>, %arg8: memref<1x128xf32, #tpu.memory_space<vmem>>, %arg9: memref<1xf32, #tpu.memory_space<smem>>, %arg10: memref<1x8xf32, #tpu.memory_space<vmem>>) attributes {dimension_semantics = [#tpu.dimension_semantics<parallel>], iteration_bounds = array<i64: 1>, scalar_prefetch = 0 : i64, scratch_operands = 0 : i64, tpu.core_type = #tpu.core_type<tc>, window_params = [{transform_indices = @transform_0, window_bounds = array<i64: 8, 32>}, {transform_indices = @transform_1, window_bounds = array<i64: 8, 32>}, {transform_indices = @transform_2, window_bounds = array<i64: 8, 32>}, {pipeline_mode = #tpu.pipeline_mode<synchronous>, transform_indices = @transform_3, window_bounds = array<i64: 32, 128>}, {pipeline_mode = #tpu.pipeline_mode<synchronous>, transform_indices = @transform_4, window_bounds = array<i64: 32, 128>}, {pipeline_mode = #tpu.pipeline_mode<synchronous>, transform_indices = @transform_5, window_bounds = array<i64: 32, 128>}, {pipeline_mode = #tpu.pipeline_mode<synchronous>, transform_indices = @transform_6, window_bounds = array<i64: 1, 128>}, {pipeline_mode = #tpu.pipeline_mode<synchronous>, transform_indices = @transform_7, window_bounds = array<i64: 1, 128>}, {transform_indices = @transform_8, window_bounds = array<i64: 1>}, {transform_indices = @transform_9, window_bounds = array<i64: 1, 8>}]} {
    %c0 = arith.constant 0 : index
    %c0_0 = arith.constant 0 : index
    %0 = vector.load %arg1[%c0, %c0_0] : memref<8x32xf32, #tpu.memory_space<vmem>>, vector<8x32xf32>
    %c0_1 = arith.constant 0 : index
    %c0_2 = arith.constant 0 : index
    %1 = vector.load %arg4[%c0_1, %c0_2] : memref<32x128xf32, #tpu.memory_space<vmem>>, vector<32x128xf32>
    %cst = arith.constant dense<0.000000e+00> : vector<8x128xf32>
    %2 = tpu.matmul %0, %1, %cst {dimension_numbers = #tpu.dot_dimension_numbers<[1], [0], [0], [1], [0, 0, 1, 1], [], []>, precision = #tpu.contract_precision<fp32>} : vector<8x32xf32>, vector<32x128xf32>, vector<8x128xf32> -> vector<8x128xf32>
    %c0_3 = arith.constant 0 : index
    %c0_4 = arith.constant 0 : index
    %3 = vector.load %arg2[%c0_3, %c0_4] : memref<8x32xf32, #tpu.memory_space<vmem>>, vector<8x32xf32>
    %c0_5 = arith.constant 0 : index
    %c0_6 = arith.constant 0 : index
    %4 = vector.load %arg5[%c0_5, %c0_6] : memref<32x128xf32, #tpu.memory_space<vmem>>, vector<32x128xf32>
    %cst_7 = arith.constant dense<0.000000e+00> : vector<8x128xf32>
    %5 = tpu.matmul %3, %4, %cst_7 {dimension_numbers = #tpu.dot_dimension_numbers<[1], [0], [0], [1], [0, 0, 1, 1], [], []>, precision = #tpu.contract_precision<fp32>} : vector<8x32xf32>, vector<32x128xf32>, vector<8x128xf32> -> vector<8x128xf32>
    %6 = arith.addf %2, %5 : vector<8x128xf32>
    %c0_8 = arith.constant 0 : index
    %c0_9 = arith.constant 0 : index
    %7 = vector.load %arg3[%c0_8, %c0_9] : memref<8x32xf32, #tpu.memory_space<vmem>>, vector<8x32xf32>
    %c0_10 = arith.constant 0 : index
    %c0_11 = arith.constant 0 : index
    %8 = vector.load %arg6[%c0_10, %c0_11] : memref<32x128xf32, #tpu.memory_space<vmem>>, vector<32x128xf32>
    %cst_12 = arith.constant dense<0.000000e+00> : vector<8x128xf32>
    %9 = tpu.matmul %7, %8, %cst_12 {dimension_numbers = #tpu.dot_dimension_numbers<[1], [0], [0], [1], [0, 0, 1, 1], [], []>, precision = #tpu.contract_precision<fp32>} : vector<8x32xf32>, vector<32x128xf32>, vector<8x128xf32> -> vector<8x128xf32>
    %10 = arith.addf %6, %9 : vector<8x128xf32>
    %c0_13 = arith.constant 0 : index
    %c0_14 = arith.constant 0 : index
    %11 = vector.load %arg7[%c0_13, %c0_14] : memref<1x128xf32, #tpu.memory_space<vmem>>, vector<1x128xf32>
    %12 = vector.broadcast %11 : vector<1x128xf32> to vector<8x128xf32>
    %13 = arith.addf %10, %12 : vector<8x128xf32>
    %cst_15 = arith.constant 0.000000e+00 : f32
    %14 = vector.broadcast %cst_15 : f32 to vector<8x128xf32>
    %15 = arith.maximumf %13, %14 : vector<8x128xf32>
    %c0_16 = arith.constant 0 : index
    %c0_17 = arith.constant 0 : index
    %16 = vector.load %arg8[%c0_16, %c0_17] : memref<1x128xf32, #tpu.memory_space<vmem>>, vector<1x128xf32>
    %17 = vector.broadcast %16 : vector<1x128xf32> to vector<8x128xf32>
    %18 = arith.mulf %15, %17 : vector<8x128xf32>
    %cst_18 = arith.constant dense<0.000000e+00> : vector<8xf32>
    %19 = vector.multi_reduction <add>, %18, %cst_18 [1] : vector<8x128xf32> to vector<8xf32>
    %c0_19 = arith.constant 0 : index
    %20 = memref.load %arg9[%c0_19] : memref<1xf32, #tpu.memory_space<smem>>
    %21 = vector.broadcast %20 : f32 to vector<8xf32>
    %22 = arith.addf %19, %21 : vector<8xf32>
    %23 = vector.shape_cast %22 : vector<8xf32> to vector<1x8xf32>
    %c0_20 = arith.constant 0 : index
    %c0_21 = arith.constant 0 : index
    %24 = vector.load %arg10[%c0_20, %c0_21] : memref<1x8xf32, #tpu.memory_space<vmem>>, vector<1x8xf32>
    tpu.vector_store %arg10[%c0_20, %c0_21], %23 {strides = array<i32>} : memref<1x8xf32, #tpu.memory_space<vmem>>, vector<1x8xf32>,
    return
  }
  func.func @transform_0(%arg0: i32) -> (i32, i32) {
    %c0_i32 = arith.constant 0 : i32
    %c0_i32_0 = arith.constant 0 : i32
    return %arg0, %c0_i32 : i32, i32
  }
  func.func @transform_1(%arg0: i32) -> (i32, i32) {
    %c0_i32 = arith.constant 0 : i32
    %c0_i32_0 = arith.constant 0 : i32
    return %arg0, %c0_i32 : i32, i32
  }
  func.func @transform_2(%arg0: i32) -> (i32, i32) {
    %c0_i32 = arith.constant 0 : i32
    %c0_i32_0 = arith.constant 0 : i32
    return %arg0, %c0_i32 : i32, i32
  }
  func.func @transform_3(%arg0: i32) -> (i32, i32) {
    %c0_i32 = arith.constant 0 : i32
    %c0_i32_0 = arith.constant 0 : i32
    %c0_i32_1 = arith.constant 0 : i32
    return %c0_i32, %c0_i32_0 : i32, i32
  }
  func.func @transform_4(%arg0: i32) -> (i32, i32) {
    %c0_i32 = arith.constant 0 : i32
    %c0_i32_0 = arith.constant 0 : i32
    %c0_i32_1 = arith.constant 0 : i32
    return %c0_i32, %c0_i32_0 : i32, i32
  }
  func.func @transform_5(%arg0: i32) -> (i32, i32) {
    %c0_i32 = arith.constant 0 : i32
    %c0_i32_0 = arith.constant 0 : i32
    %c0_i32_1 = arith.constant 0 : i32
    return %c0_i32, %c0_i32_0 : i32, i32
  }
  func.func @transform_6(%arg0: i32) -> (i32, i32) {
    %c0_i32 = arith.constant 0 : i32
    %c0_i32_0 = arith.constant 0 : i32
    %c0_i32_1 = arith.constant 0 : i32
    return %c0_i32, %c0_i32_0 : i32, i32
  }
  func.func @transform_7(%arg0: i32) -> (i32, i32) {
    %c0_i32 = arith.constant 0 : i32
    %c0_i32_0 = arith.constant 0 : i32
    %c0_i32_1 = arith.constant 0 : i32
    return %c0_i32, %c0_i32_0 : i32, i32
  }
  func.func @transform_8(%arg0: i32) -> i32 {
    %c0_i32 = arith.constant 0 : i32
    %c0_i32_0 = arith.constant 0 : i32
    return %c0_i32 : i32
  }
  func.func @transform_9(%arg0: i32) -> (i32, i32) {
    %c0_i32 = arith.constant 0 : i32
    %c0_i32_0 = arith.constant 0 : i32
    return %c0_i32, %arg0 : i32, i32
  }
}

</mosaic_0001>

<llo_original>
// kernel: tpu_custom_call.1
$region0: #{tpu_custom_call.1}
  #allocation0 [shape = 'u32[]', space=smem, size = 0x4, offset = 0x4, fixed_abs, tag = 'smem constant byte address 0x4 - core index']
  #allocation1 [shape = 'u32[72,128]{1,0:T(1,128)}', space=vmem, size = 0x9000, scoped, tag = 'internal scratch']
  #allocation2 [shape = 'f32[1]{0:T(128)S(6)}', space=smem, size = 0x200, scoped, tag = 'scoped memory for tpu_custom_call.1']
  %s0 = inlined_call_operand.hbm [shape: f32[8,32], index: 0, kind: input, shape index: {}]
  %s1 = inlined_call_operand.hbm [shape: f32[8,32], index: 1, kind: input, shape index: {}]
  %s2 = inlined_call_operand.hbm [shape: f32[8,32], index: 2, kind: input, shape index: {}]
  %s3 = inlined_call_operand.hbm [shape: f32[32,128], index: 3, kind: input, shape index: {}]
  %s4 = inlined_call_operand.hbm [shape: f32[32,128], index: 4, kind: input, shape index: {}]
  %s5 = inlined_call_operand.hbm [shape: f32[32,128], index: 5, kind: input, shape index: {}]
  %s6 = inlined_call_operand.vmem [shape: f32[1,128], index: 6, kind: input, shape index: {}]
  %s7 = inlined_call_operand.vmem [shape: f32[1,128], index: 7, kind: input, shape index: {}]
  %s8 = inlined_call_operand.<no memory space> [shape: f32[1], index: 8, kind: input, shape index: {}]
  %s9 = inlined_call_operand.hbm [shape: f32[1,8], index: 9, kind: output, shape index: {}]
  %s10 = sld [smem:[#allocation0]]
  $region70: #{tpu_custom_call.1} parent=0
    _
  %s12 = ssub.s32 1, %s10
  %s13 = scalar_select 0, %s12, %s10
  %14 = sst [smem:[#allocation2]] %s8
  $region1: #{tpu_custom_call.1} parent=0
    #allocation3 [shape = 'u8[4096]{0}', space=vmem, size = 0x1000, scoped, tag = 'input window, operand 0, single buffered']
    #allocation4 [shape = 's32[1]{0}', space=sflag, size = 0x4, scoped, tag = 'scoped memory for tpu_custom_call.1']
    #allocation5 [shape = 's32[1]{0}', space=sflag, size = 0x4, scoped, tag = 'scoped memory for tpu_custom_call.1']
    #allocation6 [shape = 'u8[4096]{0}', space=vmem, size = 0x1000, scoped, tag = 'input window, operand 1, single buffered']
    #allocation7 [shape = 's32[1]{0}', space=sflag, size = 0x4, scoped, tag = 'scoped memory for tpu_custom_call.1']
    #allocation8 [shape = 'u8[4096]{0}', space=vmem, size = 0x1000, scoped, tag = 'input window, operand 2, single buffered']
    #allocation9 [shape = 'u8[16384]{0}', space=vmem, size = 0x4000, scoped, tag = 'input window, operand 3, single buffered']
    #allocation10 [shape = 's32[1]{0}', space=sflag, size = 0x4, scoped, tag = 'scoped memory for tpu_custom_call.1']
    #allocation11 [shape = 'u8[16384]{0}', space=vmem, size = 0x4000, scoped, tag = 'input window, operand 4, single buffered']
    #allocation12 [shape = 'u8[16384]{0}', space=vmem, size = 0x4000, scoped, tag = 'input window, operand 5, single buffered']
    #allocation13 [shape = 's32[1]{0}', space=sflag, size = 0x4, scoped, tag = 'scoped memory for tpu_custom_call.1']
    #allocation14 [shape = 'u8[512]{0}', space=vmem, size = 0x400, scoped, tag = 'output window, operand 0, single buffered']
    %15 = vsyncpa [#allocation4], 0
    %16 = vsyncpa [#allocation7], 0
    %17 = vsyncpa [#allocation10], 0
    %18 = vsyncpa [#allocation13], 0
    %19 = vsyncpa [#allocation5], 0
    // Predicated region
    $region2: #{tpu_custom_call.1} parent=1 // pred_check
      _
    $region3: #{tpu_custom_call.1} parent=1 // pred_check_branch
      %21 = sbr.rel (0) target = $region5
    $region4: #{tpu_custom_call.1} parent=1 // pred_region
      %23 = vsyncadd [#allocation4], 0
      %s25 = sshll.u32 %s0, 4
      %s26 = int_to_ptr.hbm [resolvable:$true] %s25
      %s27 = sshll.u32 [#allocation3], 4
      %s28 = int_to_ptr.vmem [resolvable:$true] %s27
      %30 = dma.hbm_to_vmem [thread:$0]  %s26, 128, %s28, [#allocation4]
    $region5: #{tpu_custom_call.1} parent=1 // pred_fallthru
      _
    // Predicated region
    $region6: #{tpu_custom_call.1} parent=1 // pred_check
      _
    $region7: #{tpu_custom_call.1} parent=1 // pred_check_branch
      %32 = sbr.rel (0) target = $region9
    $region8: #{tpu_custom_call.1} parent=1 // pred_region
      %34 = vsyncadd [#allocation7], 0
      %s36 = sshll.u32 %s1, 4
      %s37 = int_to_ptr.hbm [resolvable:$true] %s36
      %s38 = sshll.u32 [#allocation6], 4
      %s39 = int_to_ptr.vmem [resolvable:$true] %s38
      %41 = dma.hbm_to_vmem [thread:$0]  %s37, 128, %s39, [#allocation7]
    $region9: #{tpu_custom_call.1} parent=1 // pred_fallthru
      _
    // Predicated region
    $region10: #{tpu_custom_call.1} parent=1 // pred_check
      _
    $region11: #{tpu_custom_call.1} parent=1 // pred_check_branch
      %43 = sbr.rel (0) target = $region13
    $region12: #{tpu_custom_call.1} parent=1 // pred_region
      %45 = vsyncadd [#allocation7], 0
      %s47 = sshll.u32 %s2, 4
      %s48 = int_to_ptr.hbm [resolvable:$true] %s47
      %s49 = sshll.u32 [#allocation8], 4
      %s50 = int_to_ptr.vmem [resolvable:$true] %s49
      %52 = dma.hbm_to_vmem [thread:$0]  %s48, 128, %s50, [#allocation7]
    $region13: #{tpu_custom_call.1} parent=1 // pred_fallthru
      _
    // Predicated region
    $region14: #{tpu_custom_call.1} parent=1 // pred_check
      _
    $region15: #{tpu_custom_call.1} parent=1 // pred_check_branch
      %54 = sbr.rel (0) target = $region17
    $region16: #{tpu_custom_call.1} parent=1 // pred_region
      %56 = vsyncadd [#allocation10], 0
      %s57 = sshll.u32 %s3, 4
      %s58 = int_to_ptr.hbm [resolvable:$true] %s57
      %s59 = sshll.u32 [#allocation9], 4
      %s60 = int_to_ptr.vmem [resolvable:$true] %s59
      %65 = dma.hbm_to_vmem [thread:$0]  %s58, 512, %s60, [#allocation10], 128, 128, 8
    $region17: #{tpu_custom_call.1} parent=1 // pred_fallthru
      _
    // Predicated region
    $region18: #{tpu_custom_call.1} parent=1 // pred_check
      _
    $region19: #{tpu_custom_call.1} parent=1 // pred_check_branch
      %67 = sbr.rel (0) target = $region21
    $region20: #{tpu_custom_call.1} parent=1 // pred_region
      %69 = vsyncadd [#allocation10], 0
      %s70 = sshll.u32 %s4, 4
      %s71 = int_to_ptr.hbm [resolvable:$true] %s70
      %s72 = sshll.u32 [#allocation11], 4
      %s73 = int_to_ptr.vmem [resolvable:$true] %s72
      %78 = dma.hbm_to_vmem [thread:$0]  %s71, 512, %s73, [#allocation10], 128, 128, 8
    $region21: #{tpu_custom_call.1} parent=1 // pred_fallthru
      _
    // Predicated region
    $region22: #{tpu_custom_call.1} parent=1 // pred_check
      _
    $region23: #{tpu_custom_call.1} parent=1 // pred_check_branch
      %80 = sbr.rel (0) target = $region25
    $region24: #{tpu_custom_call.1} parent=1 // pred_region
      %82 = vsyncadd [#allocation13], 0
      %s83 = sshll.u32 %s5, 4
      %s84 = int_to_ptr.hbm [resolvable:$true] %s83
      %s85 = sshll.u32 [#allocation12], 4
      %s86 = int_to_ptr.vmem [resolvable:$true] %s85
      %91 = dma.hbm_to_vmem [thread:$0]  %s84, 512, %s86, [#allocation13], 128, 128, 8
    $region25: #{tpu_custom_call.1} parent=1 // pred_fallthru
      _
    // Predicated region
    $region26: #{tpu_custom_call.1} parent=1 // pred_check
      _
    $region27: #{tpu_custom_call.1} parent=1 // pred_check_branch
      %93 = sbr.rel (0) target = $region29
    $region28: #{tpu_custom_call.1} parent=1 // pred_region
      _
    $region29: #{tpu_custom_call.1} parent=1 // pred_fallthru
      _
    // Predicated region
    $region30: #{tpu_custom_call.1} parent=1 // pred_check
      _
    $region31: #{tpu_custom_call.1} parent=1 // pred_check_branch
      %95 = sbr.rel (0) target = $region33
    $region32: #{tpu_custom_call.1} parent=1 // pred_region
      _
    $region33: #{tpu_custom_call.1} parent=1 // pred_fallthru
      _
    // Predicated region
    $region34: #{tpu_custom_call.1} parent=1 // pred_check
      _
    $region35: #{tpu_custom_call.1} parent=1 // pred_check_branch
      %97 = sbr.rel (0) target = $region37
    $region36: #{tpu_custom_call.1} parent=1 // pred_region
      _
    $region37: #{tpu_custom_call.1} parent=1 // pred_fallthru
      _
    // Predicated region
    $region38: #{tpu_custom_call.1} parent=1 // pred_check
      _
    $region39: #{tpu_custom_call.1} parent=1 // pred_check_branch
      %99 = sbr.rel (0) target = $region41
    $region40: #{tpu_custom_call.1} parent=1 // pred_region
      %101 = dma.done [#allocation4], 128
    $region41: #{tpu_custom_call.1} parent=1 // pred_fallthru
      _
    // Predicated region
    $region42: #{tpu_custom_call.1} parent=1 // pred_check
      _
    $region43: #{tpu_custom_call.1} parent=1 // pred_check_branch
      %103 = sbr.rel (0) target = $region45
    $region44: #{tpu_custom_call.1} parent=1 // pred_region
      %105 = dma.done [#allocation7], 128
    $region45: #{tpu_custom_call.1} parent=1 // pred_fallthru
      _
    // Predicated region
    $region46: #{tpu_custom_call.1} parent=1 // pred_check
      _
    $region47: #{tpu_custom_call.1} parent=1 // pred_check_branch
      %107 = sbr.rel (0) target = $region49
    $region48: #{tpu_custom_call.1} parent=1 // pred_region
      %109 = dma.done [#allocation7], 128
    $region49: #{tpu_custom_call.1} parent=1 // pred_fallthru
      _
    // Predicated region
    $region50: #{tpu_custom_call.1} parent=1 // pred_check
      _
    $region51: #{tpu_custom_call.1} parent=1 // pred_check_branch
      %111 = sbr.rel (0) target = $region53
    $region52: #{tpu_custom_call.1} parent=1 // pred_region
      %113 = dma.done [#allocation10], 512
    $region53: #{tpu_custom_call.1} parent=1 // pred_fallthru
      _
    // Predicated region
    $region54: #{tpu_custom_call.1} parent=1 // pred_check
      _
    $region55: #{tpu_custom_call.1} parent=1 // pred_check_branch
      %115 = sbr.rel (0) target = $region57
    $region56: #{tpu_custom_call.1} parent=1 // pred_region
      %117 = dma.done [#allocation10], 512
    $region57: #{tpu_custom_call.1} parent=1 // pred_fallthru
      _
    // Predicated region
    $region58: #{tpu_custom_call.1} parent=1 // pred_check
      _
    $region59: #{tpu_custom_call.1} parent=1 // pred_check_branch
      %119 = sbr.rel (0) target = $region61
    $region60: #{tpu_custom_call.1} parent=1 // pred_region
      %121 = dma.done [#allocation13], 512
    $region61: #{tpu_custom_call.1} parent=1 // pred_fallthru
      _
    %v122 = vld [vmem:[#allocation3] sm:$0xff]
    %v123 = vld [vmem:[#allocation9] sm:$0xff]
    %v124 = vld [vmem:[#allocation9 + $0x8] sm:$0xff]
    %v125 = vld [vmem:[#allocation9 + $0x10] sm:$0xff]
    %v126 = vld [vmem:[#allocation9 + $0x18] sm:$0xff]
    %v127 = vld [vmem:[#allocation6] sm:$0xff]
    %v128 = vld [vmem:[#allocation11] sm:$0xff]
    %v129 = vld [vmem:[#allocation11 + $0x8] sm:$0xff]
    %v130 = vld [vmem:[#allocation11 + $0x10] sm:$0xff]
    %v131 = vld [vmem:[#allocation11 + $0x18] sm:$0xff]
    %vm132 = vcmask 261120
    %v134 = vsel %vm132, %v127, 0
    %136 = vmatpush.msra.mxu0 0.0
    %137 = vmatpush.msra.mxu0 0.0
    %138 = vmatpush.msra.mxu0 0.0
    %139 = vmatpush.msra.mxu0 0.0
    %140 = vmatpush.msra.mxu0 0.0
    %141 = vmatpush.msra.mxu0 0.0
    %142 = vmatpush.msra.mxu0 0.0
    %143 = vmatpush.msra.mxu0 0.0
    %144 = vmatpush.msra.mxu0 0.0
    %145 = vmatpush.msra.mxu0 0.0
    %146 = vmatpush.msra.mxu0 0.0
    %147 = vmatpush.msra.mxu0 0.0
    %v148 = vand.u32 %v131, 4294901760
    %149 = vmatpush.msra.mxu0 %v148
    %v150 = vand.u32 %v130, 4294901760
    %151 = vmatpush.msra.mxu0 %v150
    %v152 = vand.u32 %v129, 4294901760
    %153 = vmatpush.msra.mxu0 %v152
    %v154 = vand.u32 %v128, 4294901760
    %155 = vmatpush.msra.mxu0 %v154
    %v156 = vand.u32 %v134, 4294901760
    %v157 = vsub.f32 %v134, %v156
    %v158 = vand.u32 %v157, 4294901760
    %v159 = vsub.f32 %v157, %v158
    %v160 = vand.u32 %v159, 4294901760
    %161 = vmatmul.f32.gmra.mxu0 %v160
    %v162 = vpop.f32.mrf.mxu0
    %v163 = vadd.f32 0.0, %v162
    %164 = vdwg.mxu0
    %165 = vmatpush.msra.mxu0 0.0
    %166 = vmatpush.msra.mxu0 0.0
    %167 = vmatpush.msra.mxu0 0.0
    %168 = vmatpush.msra.mxu0 0.0
    %169 = vmatpush.msra.mxu0 0.0
    %170 = vmatpush.msra.mxu0 0.0
    %171 = vmatpush.msra.mxu0 0.0
    %172 = vmatpush.msra.mxu0 0.0
    %173 = vmatpush.msra.mxu0 0.0
    %174 = vmatpush.msra.mxu0 0.0
    %175 = vmatpush.msra.mxu0 0.0
    %176 = vmatpush.msra.mxu0 0.0
    %v177 = vand.u32 %v131, 4294901760
    %v178 = vsub.f32 %v131, %v177
    %v179 = vand.u32 %v178, 4294901760
    %v180 = vsub.f32 %v178, %v179
    %v181 = vand.u32 %v180, 4294901760
    %182 = vmatpush.msra.mxu0 %v181
    %v183 = vand.u32 %v130, 4294901760
    %v184 = vsub.f32 %v130, %v183
    %v185 = vand.u32 %v184, 4294901760
    %v186 = vsub.f32 %v184, %v185
    %v187 = vand.u32 %v186, 4294901760
    %188 = vmatpush.msra.mxu0 %v187
    %v189 = vand.u32 %v129, 4294901760
    %v190 = vsub.f32 %v129, %v189
    %v191 = vand.u32 %v190, 4294901760
    %v192 = vsub.f32 %v190, %v191
    %v193 = vand.u32 %v192, 4294901760
    %194 = vmatpush.msra.mxu0 %v193
    %v195 = vand.u32 %v128, 4294901760
    %v196 = vsub.f32 %v128, %v195
    %v197 = vand.u32 %v196, 4294901760
    %v198 = vsub.f32 %v196, %v197
    %v199 = vand.u32 %v198, 4294901760
    %200 = vmatpush.msra.mxu0 %v199
    %v201 = vand.u32 %v134, 4294901760
    %202 = vmatmul.f32.gmra.mxu0 %v201
    %v203 = vpop.f32.mrf.mxu0
    %v204 = vadd.f32 %v163, %v203
    %205 = vdwg.mxu0
    %206 = vmatpush.msra.mxu0 0.0
    %207 = vmatpush.msra.mxu0 0.0
    %208 = vmatpush.msra.mxu0 0.0
    %209 = vmatpush.msra.mxu0 0.0
    %210 = vmatpush.msra.mxu0 0.0
    %211 = vmatpush.msra.mxu0 0.0
    %212 = vmatpush.msra.mxu0 0.0
    %213 = vmatpush.msra.mxu0 0.0
    %214 = vmatpush.msra.mxu0 0.0
    %215 = vmatpush.msra.mxu0 0.0
    %216 = vmatpush.msra.mxu0 0.0
    %217 = vmatpush.msra.mxu0 0.0
    %v218 = vand.u32 %v131, 4294901760
    %v219 = vsub.f32 %v131, %v218
    %220 = vmatpush.msra.mxu0 %v219
    %v221 = vand.u32 %v130, 4294901760
    %v222 = vsub.f32 %v130, %v221
    %223 = vmatpush.msra.mxu0 %v222
    %v224 = vand.u32 %v129, 4294901760
    %v225 = vsub.f32 %v129, %v224
    %226 = vmatpush.msra.mxu0 %v225
    %v227 = vand.u32 %v128, 4294901760
    %v228 = vsub.f32 %v128, %v227
    %229 = vmatpush.msra.mxu0 %v228
    %v230 = vand.u32 %v134, 4294901760
    %v231 = vsub.f32 %v134, %v230
    %232 = vmatmul.f32.gmra.mxu0 %v231
    %v233 = vpop.f32.mrf.mxu0
    %v234 = vadd.f32 %v204, %v233
    %235 = vdwg.mxu0
    %236 = vmatpush.msra.mxu0 0.0
    %237 = vmatpush.msra.mxu0 0.0
    %238 = vmatpush.msra.mxu0 0.0
    %239 = vmatpush.msra.mxu0 0.0
    %240 = vmatpush.msra.mxu0 0.0
    %241 = vmatpush.msra.mxu0 0.0
    %242 = vmatpush.msra.mxu0 0.0
    %243 = vmatpush.msra.mxu0 0.0
    %244 = vmatpush.msra.mxu0 0.0
    %245 = vmatpush.msra.mxu0 0.0
    %246 = vmatpush.msra.mxu0 0.0
    %247 = vmatpush.msra.mxu0 0.0
    %v248 = vand.u32 %v131, 4294901760
    %249 = vmatpush.msra.mxu0 %v248
    %v250 = vand.u32 %v130, 4294901760
    %251 = vmatpush.msra.mxu0 %v250
    %v252 = vand.u32 %v129, 4294901760
    %253 = vmatpush.msra.mxu0 %v252
    %v254 = vand.u32 %v128, 4294901760
    %255 = vmatpush.msra.mxu0 %v254
    %v256 = vand.u32 %v134, 4294901760
    %v257 = vsub.f32 %v134, %v256
    %v258 = vand.u32 %v257, 4294901760
    %259 = vmatmul.f32.gmra.mxu0 %v258
    %v260 = vpop.f32.mrf.mxu0
    %v261 = vadd.f32 %v234, %v260
    %262 = vdwg.mxu0
    %263 = vmatpush.msra.mxu0 0.0
    %264 = vmatpush.msra.mxu0 0.0
    %265 = vmatpush.msra.mxu0 0.0
    %266 = vmatpush.msra.mxu0 0.0
    %267 = vmatpush.msra.mxu0 0.0
    %268 = vmatpush.msra.mxu0 0.0
    %269 = vmatpush.msra.mxu0 0.0
    %270 = vmatpush.msra.mxu0 0.0
    %271 = vmatpush.msra.mxu0 0.0
    %272 = vmatpush.msra.mxu0 0.0
    %273 = vmatpush.msra.mxu0 0.0
    %274 = vmatpush.msra.mxu0 0.0
    %v275 = vand.u32 %v131, 4294901760
    %v276 = vsub.f32 %v131, %v275
    %v277 = vand.u32 %v276, 4294901760
    %278 = vmatpush.msra.mxu0 %v277
    %v279 = vand.u32 %v130, 4294901760
    %v280 = vsub.f32 %v130, %v279
    %v281 = vand.u32 %v280, 4294901760
    %282 = vmatpush.msra.mxu0 %v281
    %v283 = vand.u32 %v129, 4294901760
    %v284 = vsub.f32 %v129, %v283
    %v285 = vand.u32 %v284, 4294901760
    %286 = vmatpush.msra.mxu0 %v285
    %v287 = vand.u32 %v128, 4294901760
    %v288 = vsub.f32 %v128, %v287
    %v289 = vand.u32 %v288, 4294901760
    %290 = vmatpush.msra.mxu0 %v289
    %v291 = vand.u32 %v134, 4294901760
    %292 = vmatmul.f32.gmra.mxu0 %v291
    %v293 = vpop.f32.mrf.mxu0
    %v294 = vadd.f32 %v261, %v293
    %295 = vdwg.mxu0
    %296 = vmatpush.msra.mxu0 0.0
    %297 = vmatpush.msra.mxu0 0.0
    %298 = vmatpush.msra.mxu0 0.0
    %299 = vmatpush.msra.mxu0 0.0
    %300 = vmatpush.msra.mxu0 0.0
    %301 = vmatpush.msra.mxu0 0.0
    %302 = vmatpush.msra.mxu0 0.0
    %303 = vmatpush.msra.mxu0 0.0
    %304 = vmatpush.msra.mxu0 0.0
    %305 = vmatpush.msra.mxu0 0.0
    %306 = vmatpush.msra.mxu0 0.0
    %307 = vmatpush.msra.mxu0 0.0
    %v308 = vand.u32 %v131, 4294901760
    %309 = vmatpush.msra.mxu0 %v308
    %v310 = vand.u32 %v130, 4294901760
    %311 = vmatpush.msra.mxu0 %v310
    %v312 = vand.u32 %v129, 4294901760
    %313 = vmatpush.msra.mxu0 %v312
    %v314 = vand.u32 %v128, 4294901760
    %315 = vmatpush.msra.mxu0 %v314
    %v316 = vand.u32 %v134, 4294901760
    %317 = vmatmul.f32.gmra.mxu0 %v316
    %v318 = vpop.f32.mrf.mxu0
    %v319 = vadd.f32 %v294, %v318
    %320 = vdwg.mxu0
    %v322 = vsel %vm132, %v122, 0
    %324 = vmatpush.msra.mxu0 0.0
    %325 = vmatpush.msra.mxu0 0.0
    %326 = vmatpush.msra.mxu0 0.0
    %327 = vmatpush.msra.mxu0 0.0
    %328 = vmatpush.msra.mxu0 0.0
    %329 = vmatpush.msra.mxu0 0.0
    %330 = vmatpush.msra.mxu0 0.0
    %331 = vmatpush.msra.mxu0 0.0
    %332 = vmatpush.msra.mxu0 0.0
    %333 = vmatpush.msra.mxu0 0.0
    %334 = vmatpush.msra.mxu0 0.0
    %335 = vmatpush.msra.mxu0 0.0
    %v336 = vand.u32 %v126, 4294901760
    %337 = vmatpush.msra.mxu0 %v336
    %v338 = vand.u32 %v125, 4294901760
    %339 = vmatpush.msra.mxu0 %v338
    %v340 = vand.u32 %v124, 4294901760
    %341 = vmatpush.msra.mxu0 %v340
    %v342 = vand.u32 %v123, 4294901760
    %343 = vmatpush.msra.mxu0 %v342
    %v344 = vand.u32 %v322, 4294901760
    %v345 = vsub.f32 %v322, %v344
    %v346 = vand.u32 %v345, 4294901760
    %v347 = vsub.f32 %v345, %v346
    %v348 = vand.u32 %v347, 4294901760
    %349 = vmatmul.f32.gmra.mxu0 %v348
    %v350 = vpop.f32.mrf.mxu0
    %v351 = vadd.f32 %v319, %v350
    %352 = vdwg.mxu0
    %353 = vmatpush.msra.mxu0 0.0
    %354 = vmatpush.msra.mxu0 0.0
    %355 = vmatpush.msra.mxu0 0.0
    %356 = vmatpush.msra.mxu0 0.0
    %357 = vmatpush.msra.mxu0 0.0
    %358 = vmatpush.msra.mxu0 0.0
    %359 = vmatpush.msra.mxu0 0.0
    %360 = vmatpush.msra.mxu0 0.0
    %361 = vmatpush.msra.mxu0 0.0
    %362 = vmatpush.msra.mxu0 0.0
    %363 = vmatpush.msra.mxu0 0.0
    %364 = vmatpush.msra.mxu0 0.0
    %v365 = vand.u32 %v126, 4294901760
    %v366 = vsub.f32 %v126, %v365
    %v367 = vand.u32 %v366, 4294901760
    %v368 = vsub.f32 %v366, %v367
    %v369 = vand.u32 %v368, 4294901760
    %370 = vmatpush.msra.mxu0 %v369
    %v371 = vand.u32 %v125, 4294901760
    %v372 = vsub.f32 %v125, %v371
    %v373 = vand.u32 %v372, 4294901760
    %v374 = vsub.f32 %v372, %v373
    %v375 = vand.u32 %v374, 4294901760
    %376 = vmatpush.msra.mxu0 %v375
    %v377 = vand.u32 %v124, 4294901760
    %v378 = vsub.f32 %v124, %v377
    %v379 = vand.u32 %v378, 4294901760
    %v380 = vsub.f32 %v378, %v379
    %v381 = vand.u32 %v380, 4294901760
    %382 = vmatpush.msra.mxu0 %v381
    %v383 = vand.u32 %v123, 4294901760
    %v384 = vsub.f32 %v123, %v383
    %v385 = vand.u32 %v384, 4294901760
    %v386 = vsub.f32 %v384, %v385
    %v387 = vand.u32 %v386, 4294901760
    %388 = vmatpush.msra.mxu0 %v387
    %v389 = vand.u32 %v322, 4294901760
    %390 = vmatmul.f32.gmra.mxu0 %v389
    %v391 = vpop.f32.mrf.mxu0
    %v392 = vadd.f32 %v351, %v391
    %393 = vdwg.mxu0
    %394 = vmatpush.msra.mxu0 0.0
    %395 = vmatpush.msra.mxu0 0.0
    %396 = vmatpush.msra.mxu0 0.0
    %397 = vmatpush.msra.mxu0 0.0
    %398 = vmatpush.msra.mxu0 0.0
    %399 = vmatpush.msra.mxu0 0.0
    %400 = vmatpush.msra.mxu0 0.0
    %401 = vmatpush.msra.mxu0 0.0
    %402 = vmatpush.msra.mxu0 0.0
    %403 = vmatpush.msra.mxu0 0.0
    %404 = vmatpush.msra.mxu0 0.0
    %405 = vmatpush.msra.mxu0 0.0
    %v406 = vand.u32 %v126, 4294901760
    %v407 = vsub.f32 %v126, %v406
    %408 = vmatpush.msra.mxu0 %v407
    %v409 = vand.u32 %v125, 4294901760
    %v410 = vsub.f32 %v125, %v409
    %411 = vmatpush.msra.mxu0 %v410
    %v412 = vand.u32 %v124, 4294901760
    %v413 = vsub.f32 %v124, %v412
    %414 = vmatpush.msra.mxu0 %v413
    %v415 = vand.u32 %v123, 4294901760
    %v416 = vsub.f32 %v123, %v415
    %417 = vmatpush.msra.mxu0 %v416
    %v418 = vand.u32 %v322, 4294901760
    %v419 = vsub.f32 %v322, %v418
    %420 = vmatmul.f32.gmra.mxu0 %v419
    %v421 = vpop.f32.mrf.mxu0
    %v422 = vadd.f32 %v392, %v421
    %423 = vdwg.mxu0
    %424 = vmatpush.msra.mxu0 0.0
    %425 = vmatpush.msra.mxu0 0.0
    %426 = vmatpush.msra.mxu0 0.0
    %427 = vmatpush.msra.mxu0 0.0
    %428 = vmatpush.msra.mxu0 0.0
    %429 = vmatpush.msra.mxu0 0.0
    %430 = vmatpush.msra.mxu0 0.0
    %431 = vmatpush.msra.mxu0 0.0
    %432 = vmatpush.msra.mxu0 0.0
    %433 = vmatpush.msra.mxu0 0.0
    %434 = vmatpush.msra.mxu0 0.0
    %435 = vmatpush.msra.mxu0 0.0
    %v436 = vand.u32 %v126, 4294901760
    %437 = vmatpush.msra.mxu0 %v436
    %v438 = vand.u32 %v125, 4294901760
    %439 = vmatpush.msra.mxu0 %v438
    %v440 = vand.u32 %v124, 4294901760
    %441 = vmatpush.msra.mxu0 %v440
    %v442 = vand.u32 %v123, 4294901760
    %443 = vmatpush.msra.mxu0 %v442
    %v444 = vand.u32 %v322, 4294901760
    %v445 = vsub.f32 %v322, %v444
    %v446 = vand.u32 %v445, 4294901760
    %447 = vmatmul.f32.gmra.mxu0 %v446
    %v448 = vpop.f32.mrf.mxu0
    %v449 = vadd.f32 %v422, %v448
    %450 = vdwg.mxu0
    %451 = vmatpush.msra.mxu0 0.0
    %452 = vmatpush.msra.mxu0 0.0
    %453 = vmatpush.msra.mxu0 0.0
    %454 = vmatpush.msra.mxu0 0.0
    %455 = vmatpush.msra.mxu0 0.0
    %456 = vmatpush.msra.mxu0 0.0
    %457 = vmatpush.msra.mxu0 0.0
    %458 = vmatpush.msra.mxu0 0.0
    %459 = vmatpush.msra.mxu0 0.0
    %460 = vmatpush.msra.mxu0 0.0
    %461 = vmatpush.msra.mxu0 0.0
    %462 = vmatpush.msra.mxu0 0.0
    %v463 = vand.u32 %v126, 4294901760
    %v464 = vsub.f32 %v126, %v463
    %v465 = vand.u32 %v464, 4294901760
    %466 = vmatpush.msra.mxu0 %v465
    %v467 = vand.u32 %v125, 4294901760
    %v468 = vsub.f32 %v125, %v467
    %v469 = vand.u32 %v468, 4294901760
    %470 = vmatpush.msra.mxu0 %v469
    %v471 = vand.u32 %v124, 4294901760
    %v472 = vsub.f32 %v124, %v471
    %v473 = vand.u32 %v472, 4294901760
    %474 = vmatpush.msra.mxu0 %v473
    %v475 = vand.u32 %v123, 4294901760
    %v476 = vsub.f32 %v123, %v475
    %v477 = vand.u32 %v476, 4294901760
    %478 = vmatpush.msra.mxu0 %v477
    %v479 = vand.u32 %v322, 4294901760
    %480 = vmatmul.f32.gmra.mxu0 %v479
    %v481 = vpop.f32.mrf.mxu0
    %v482 = vadd.f32 %v449, %v481
    %483 = vdwg.mxu0
    %484 = vmatpush.msra.mxu0 0.0
    %485 = vmatpush.msra.mxu0 0.0
    %486 = vmatpush.msra.mxu0 0.0
    %487 = vmatpush.msra.mxu0 0.0
    %488 = vmatpush.msra.mxu0 0.0
    %489 = vmatpush.msra.mxu0 0.0
    %490 = vmatpush.msra.mxu0 0.0
    %491 = vmatpush.msra.mxu0 0.0
    %492 = vmatpush.msra.mxu0 0.0
    %493 = vmatpush.msra.mxu0 0.0
    %494 = vmatpush.msra.mxu0 0.0
    %495 = vmatpush.msra.mxu0 0.0
    %v496 = vand.u32 %v126, 4294901760
    %497 = vmatpush.msra.mxu0 %v496
    %v498 = vand.u32 %v125, 4294901760
    %499 = vmatpush.msra.mxu0 %v498
    %v500 = vand.u32 %v124, 4294901760
    %501 = vmatpush.msra.mxu0 %v500
    %v502 = vand.u32 %v123, 4294901760
    %503 = vmatpush.msra.mxu0 %v502
    %v504 = vand.u32 %v322, 4294901760
    %505 = vmatmul.f32.gmra.mxu0 %v504
    %v506 = vpop.f32.mrf.mxu0
    %v507 = vadd.f32 %v482, %v506
    %508 = vdwg.mxu0
    %v509 = vld [vmem:[#allocation8] sm:$0xff]
    %v510 = vld [vmem:[#allocation12] sm:$0xff]
    %v511 = vld [vmem:[#allocation12 + $0x8] sm:$0xff]
    %v512 = vld [vmem:[#allocation12 + $0x10] sm:$0xff]
    %v513 = vld [vmem:[#allocation12 + $0x18] sm:$0xff]
    %v515 = vsel %vm132, %v509, 0
    %517 = vmatpush.msra.mxu0 0.0
    %518 = vmatpush.msra.mxu0 0.0
    %519 = vmatpush.msra.mxu0 0.0
    %520 = vmatpush.msra.mxu0 0.0
    %521 = vmatpush.msra.mxu0 0.0
    %522 = vmatpush.msra.mxu0 0.0
    %523 = vmatpush.msra.mxu0 0.0
    %524 = vmatpush.msra.mxu0 0.0
    %525 = vmatpush.msra.mxu0 0.0
    %526 = vmatpush.msra.mxu0 0.0
    %527 = vmatpush.msra.mxu0 0.0
    %528 = vmatpush.msra.mxu0 0.0
    %v529 = vand.u32 %v513, 4294901760
    %530 = vmatpush.msra.mxu0 %v529
    %v531 = vand.u32 %v512, 4294901760
    %532 = vmatpush.msra.mxu0 %v531
    %v533 = vand.u32 %v511, 4294901760
    %534 = vmatpush.msra.mxu0 %v533
    %v535 = vand.u32 %v510, 4294901760
    %536 = vmatpush.msra.mxu0 %v535
    %v537 = vand.u32 %v515, 4294901760
    %v538 = vsub.f32 %v515, %v537
    %v539 = vand.u32 %v538, 4294901760
    %v540 = vsub.f32 %v538, %v539
    %v541 = vand.u32 %v540, 4294901760
    %542 = vmatmul.f32.gmra.mxu0 %v541
    %v543 = vpop.f32.mrf.mxu0
    %v544 = vadd.f32 0.0, %v543
    %545 = vdwg.mxu0
    %546 = vmatpush.msra.mxu0 0.0
    %547 = vmatpush.msra.mxu0 0.0
    %548 = vmatpush.msra.mxu0 0.0
    %549 = vmatpush.msra.mxu0 0.0
    %550 = vmatpush.msra.mxu0 0.0
    %551 = vmatpush.msra.mxu0 0.0
    %552 = vmatpush.msra.mxu0 0.0
    %553 = vmatpush.msra.mxu0 0.0
    %554 = vmatpush.msra.mxu0 0.0
    %555 = vmatpush.msra.mxu0 0.0
    %556 = vmatpush.msra.mxu0 0.0
    %557 = vmatpush.msra.mxu0 0.0
    %v558 = vand.u32 %v513, 4294901760
    %v559 = vsub.f32 %v513, %v558
    %v560 = vand.u32 %v559, 4294901760
    %v561 = vsub.f32 %v559, %v560
    %v562 = vand.u32 %v561, 4294901760
    %563 = vmatpush.msra.mxu0 %v562
    %v564 = vand.u32 %v512, 4294901760
    %v565 = vsub.f32 %v512, %v564
    %v566 = vand.u32 %v565, 4294901760
    %v567 = vsub.f32 %v565, %v566
    %v568 = vand.u32 %v567, 4294901760
    %569 = vmatpush.msra.mxu0 %v568
    %v570 = vand.u32 %v511, 4294901760
    %v571 = vsub.f32 %v511, %v570
    %v572 = vand.u32 %v571, 4294901760
    %v573 = vsub.f32 %v571, %v572
    %v574 = vand.u32 %v573, 4294901760
    %575 = vmatpush.msra.mxu0 %v574
    %v576 = vand.u32 %v510, 4294901760
    %v577 = vsub.f32 %v510, %v576
    %v578 = vand.u32 %v577, 4294901760
    %v579 = vsub.f32 %v577, %v578
    %v580 = vand.u32 %v579, 4294901760
    %581 = vmatpush.msra.mxu0 %v580
    %v582 = vand.u32 %v515, 4294901760
    %583 = vmatmul.f32.gmra.mxu0 %v582
    %v584 = vpop.f32.mrf.mxu0
    %v585 = vadd.f32 %v544, %v584
    %586 = vdwg.mxu0
    %587 = vmatpush.msra.mxu0 0.0
    %588 = vmatpush.msra.mxu0 0.0
    %589 = vmatpush.msra.mxu0 0.0
    %590 = vmatpush.msra.mxu0 0.0
    %591 = vmatpush.msra.mxu0 0.0
    %592 = vmatpush.msra.mxu0 0.0
    %593 = vmatpush.msra.mxu0 0.0
    %594 = vmatpush.msra.mxu0 0.0
    %595 = vmatpush.msra.mxu0 0.0
    %596 = vmatpush.msra.mxu0 0.0
    %597 = vmatpush.msra.mxu0 0.0
    %598 = vmatpush.msra.mxu0 0.0
    %v599 = vand.u32 %v513, 4294901760
    %v600 = vsub.f32 %v513, %v599
    %601 = vmatpush.msra.mxu0 %v600
    %v602 = vand.u32 %v512, 4294901760
    %v603 = vsub.f32 %v512, %v602
    %604 = vmatpush.msra.mxu0 %v603
    %v605 = vand.u32 %v511, 4294901760
    %v606 = vsub.f32 %v511, %v605
    %607 = vmatpush.msra.mxu0 %v606
    %v608 = vand.u32 %v510, 4294901760
    %v609 = vsub.f32 %v510, %v608
    %610 = vmatpush.msra.mxu0 %v609
    %v611 = vand.u32 %v515, 4294901760
    %v612 = vsub.f32 %v515, %v611
    %613 = vmatmul.f32.gmra.mxu0 %v612
    %v614 = vpop.f32.mrf.mxu0
    %v615 = vadd.f32 %v585, %v614
    %616 = vdwg.mxu0
    %617 = vmatpush.msra.mxu0 0.0
    %618 = vmatpush.msra.mxu0 0.0
    %619 = vmatpush.msra.mxu0 0.0
    %620 = vmatpush.msra.mxu0 0.0
    %621 = vmatpush.msra.mxu0 0.0
    %622 = vmatpush.msra.mxu0 0.0
    %623 = vmatpush.msra.mxu0 0.0
    %624 = vmatpush.msra.mxu0 0.0
    %625 = vmatpush.msra.mxu0 0.0
    %626 = vmatpush.msra.mxu0 0.0
    %627 = vmatpush.msra.mxu0 0.0
    %628 = vmatpush.msra.mxu0 0.0
    %v629 = vand.u32 %v513, 4294901760
    %630 = vmatpush.msra.mxu0 %v629
    %v631 = vand.u32 %v512, 4294901760
    %632 = vmatpush.msra.mxu0 %v631
    %v633 = vand.u32 %v511, 4294901760
    %634 = vmatpush.msra.mxu0 %v633
    %v635 = vand.u32 %v510, 4294901760
    %636 = vmatpush.msra.mxu0 %v635
    %v637 = vand.u32 %v515, 4294901760
    %v638 = vsub.f32 %v515, %v637
    %v639 = vand.u32 %v638, 4294901760
    %640 = vmatmul.f32.gmra.mxu0 %v639
    %v641 = vpop.f32.mrf.mxu0
    %v642 = vadd.f32 %v615, %v641
    %643 = vdwg.mxu0
    %644 = vmatpush.msra.mxu0 0.0
    %645 = vmatpush.msra.mxu0 0.0
    %646 = vmatpush.msra.mxu0 0.0
    %647 = vmatpush.msra.mxu0 0.0
    %648 = vmatpush.msra.mxu0 0.0
    %649 = vmatpush.msra.mxu0 0.0
    %650 = vmatpush.msra.mxu0 0.0
    %651 = vmatpush.msra.mxu0 0.0
    %652 = vmatpush.msra.mxu0 0.0
    %653 = vmatpush.msra.mxu0 0.0
    %654 = vmatpush.msra.mxu0 0.0
    %655 = vmatpush.msra.mxu0 0.0
    %v656 = vand.u32 %v513, 4294901760
    %v657 = vsub.f32 %v513, %v656
    %v658 = vand.u32 %v657, 4294901760
    %659 = vmatpush.msra.mxu0 %v658
    %v660 = vand.u32 %v512, 4294901760
    %v661 = vsub.f32 %v512, %v660
    %v662 = vand.u32 %v661, 4294901760
    %663 = vmatpush.msra.mxu0 %v662
    %v664 = vand.u32 %v511, 4294901760
    %v665 = vsub.f32 %v511, %v664
    %v666 = vand.u32 %v665, 4294901760
    %667 = vmatpush.msra.mxu0 %v666
    %v668 = vand.u32 %v510, 4294901760
    %v669 = vsub.f32 %v510, %v668
    %v670 = vand.u32 %v669, 4294901760
    %671 = vmatpush.msra.mxu0 %v670
    %v672 = vand.u32 %v515, 4294901760
    %673 = vmatmul.f32.gmra.mxu0 %v672
    %v674 = vpop.f32.mrf.mxu0
    %v675 = vadd.f32 %v642, %v674
    %676 = vdwg.mxu0
    %677 = vmatpush.msra.mxu0 0.0
    %678 = vmatpush.msra.mxu0 0.0
    %679 = vmatpush.msra.mxu0 0.0
    %680 = vmatpush.msra.mxu0 0.0
    %681 = vmatpush.msra.mxu0 0.0
    %682 = vmatpush.msra.mxu0 0.0
    %683 = vmatpush.msra.mxu0 0.0
    %684 = vmatpush.msra.mxu0 0.0
    %685 = vmatpush.msra.mxu0 0.0
    %686 = vmatpush.msra.mxu0 0.0
    %687 = vmatpush.msra.mxu0 0.0
    %688 = vmatpush.msra.mxu0 0.0
    %v689 = vand.u32 %v513, 4294901760
    %690 = vmatpush.msra.mxu0 %v689
    %v691 = vand.u32 %v512, 4294901760
    %692 = vmatpush.msra.mxu0 %v691
    %v693 = vand.u32 %v511, 4294901760
    %694 = vmatpush.msra.mxu0 %v693
    %v695 = vand.u32 %v510, 4294901760
    %696 = vmatpush.msra.mxu0 %v695
    %v697 = vand.u32 %v515, 4294901760
    %698 = vmatmul.f32.gmra.mxu0 %v697
    %v699 = vpop.f32.mrf.mxu0
    %v700 = vadd.f32 %v675, %v699
    %701 = vdwg.mxu0
    %v702 = vadd.f32 %v507, %v700
    %v703 = vld [vmem:[%s6] sm:$0x1]
    %v705 = vperm.slane %v703, 0
    %v707 = vadd.f32 %v702, %v705
    %v708 = vmax.f32 %v707, 0.0
    %v709 = vld [vmem:[%s7] sm:$0x1]
    %v711 = vperm.slane %v709, 0
    %v713 = vmul.f32 %v708, %v711
    %714 = vadd.xlane.f32.xlu0 %v713
    %v715 = vpop.xlane.xlu0 %714
    %s716 = sld [smem:[#allocation2]]
    %v717 = vstv %s716
    %v718 = vadd.f32 %v715, %v717
    %v720 = vlaneseq
    %v721 = vand.u32 %v720, 127
    %v722 = vperm.slane %v718, %v721
    %vm724 = vcmask 57344
    %725 = vst.msk [vmem:[#allocation14] sm:$0x1] %vm724, %v722
    // Predicated region
    $region62: #{tpu_custom_call.1} parent=1 // pred_check
      _
    $region63: #{tpu_custom_call.1} parent=1 // pred_check_branch
      %727 = sbr.rel (0) target = $region65
    $region64: #{tpu_custom_call.1} parent=1 // pred_region
      %729 = vsyncadd [#allocation5], 0
      %s731 = sshll.u32 [#allocation14], 4
      %s732 = int_to_ptr.vmem [resolvable:$true] %s731
      %s733 = sshll.u32 %s9, 4
      %s734 = int_to_ptr.hbm [resolvable:$true] %s733
      %736 = dma.vmem_to_hbm [thread:$0]  %s732, 16, %s734, [#allocation5]
    $region65: #{tpu_custom_call.1} parent=1 // pred_fallthru
      _
    // Predicated region
    $region66: #{tpu_custom_call.1} parent=1 // pred_check
      _
    $region67: #{tpu_custom_call.1} parent=1 // pred_check_branch
      %738 = sbr.rel (0) target = $region69
    $region68: #{tpu_custom_call.1} parent=1 // pred_region
      %740 = dma.done [#allocation5], 16
    $region69: #{tpu_custom_call.1} parent=1 // pred_fallthru
      _
    %741 = vsyncpa [#allocation4], 1
    %742 = vsyncpa [#allocation7], 1
    %743 = vsyncpa [#allocation10], 1
    %744 = vsyncpa [#allocation13], 1
    %745 = vsyncpa [#allocation5], 1

// kernel: tpu_custom_call.1
$region0: #{tpu_custom_call.1}
  #allocation0 [shape = 'u32[]', space=smem, size = 0x4, offset = 0x4, fixed_abs, tag = 'smem constant byte address 0x4 - core index']
  #allocation1 [shape = 'u32[72,128]{1,0:T(1,128)}', space=vmem, size = 0x9000, scoped, tag = 'internal scratch']
  #allocation2 [shape = 'f32[1]{0:T(128)S(6)}', space=smem, size = 0x200, scoped, tag = 'scoped memory for tpu_custom_call.1']
  %s0 = inlined_call_operand.hbm [shape: f32[8,32], index: 0, kind: input, shape index: {}]
  %s1 = inlined_call_operand.hbm [shape: f32[8,32], index: 1, kind: input, shape index: {}]
  %s2 = inlined_call_operand.hbm [shape: f32[8,32], index: 2, kind: input, shape index: {}]
  %s3 = inlined_call_operand.hbm [shape: f32[32,128], index: 3, kind: input, shape index: {}]
  %s4 = inlined_call_operand.hbm [shape: f32[32,128], index: 4, kind: input, shape index: {}]
  %s5 = inlined_call_operand.hbm [shape: f32[32,128], index: 5, kind: input, shape index: {}]
  %s6 = inlined_call_operand.vmem [shape: f32[1,128], index: 6, kind: input, shape index: {}]
  %s7 = inlined_call_operand.vmem [shape: f32[1,128], index: 7, kind: input, shape index: {}]
  %s8 = inlined_call_operand.<no memory space> [shape: f32[1], index: 8, kind: input, shape index: {}]
  %s9 = inlined_call_operand.hbm [shape: f32[1,8], index: 9, kind: output, shape index: {}]
  %s10 = sld [smem:[#allocation0]]
  $region70: #{tpu_custom_call.1} parent=0
    _
  %s12 = ssub.s32 1, %s10
  %s13 = scalar_select 0, %s12, %s10
  %14 = sst [smem:[#allocation2]] %s8
  $region1: #{tpu_custom_call.1} parent=0
    #allocation3 [shape = 'u8[4096]{0}', space=vmem, size = 0x1000, scoped, tag = 'input window, operand 0, single buffered']
    #allocation4 [shape = 's32[1]{0}', space=sflag, size = 0x4, scoped, tag = 'scoped memory for tpu_custom_call.1']
    #allocation5 [shape = 's32[1]{0}', space=sflag, size = 0x4, scoped, tag = 'scoped memory for tpu_custom_call.1']
    #allocation6 [shape = 'u8[4096]{0}', space=vmem, size = 0x1000, scoped, tag = 'input window, operand 1, single buffered']
    #allocation7 [shape = 's32[1]{0}', space=sflag, size = 0x4, scoped, tag = 'scoped memory for tpu_custom_call.1']
    #allocation8 [shape = 'u8[4096]{0}', space=vmem, size = 0x1000, scoped, tag = 'input window, operand 2, single buffered']
    #allocation9 [shape = 'u8[16384]{0}', space=vmem, size = 0x4000, scoped, tag = 'input window, operand 3, single buffered']
    #allocation10 [shape = 's32[1]{0}', space=sflag, size = 0x4, scoped, tag = 'scoped memory for tpu_custom_call.1']
    #allocation11 [shape = 'u8[16384]{0}', space=vmem, size = 0x4000, scoped, tag = 'input window, operand 4, single buffered']
    #allocation12 [shape = 'u8[16384]{0}', space=vmem, size = 0x4000, scoped, tag = 'input window, operand 5, single buffered']
    #allocation13 [shape = 's32[1]{0}', space=sflag, size = 0x4, scoped, tag = 'scoped memory for tpu_custom_call.1']
    #allocation14 [shape = 'u8[512]{0}', space=vmem, size = 0x400, scoped, tag = 'output window, operand 0, single buffered']
    %15 = vsyncpa [#allocation4], 0
    %16 = vsyncpa [#allocation7], 0
    %17 = vsyncpa [#allocation10], 0
    %18 = vsyncpa [#allocation13], 0
    %19 = vsyncpa [#allocation5], 0
    // Predicated region
    $region2: #{tpu_custom_call.1} parent=1 // pred_check
      _
    $region3: #{tpu_custom_call.1} parent=1 // pred_check_branch
      %21 = sbr.rel (0) target = $region5
    $region4: #{tpu_custom_call.1} parent=1 // pred_region
      %23 = vsyncadd [#allocation4], 0
      %s25 = sshll.u32 %s0, 4
      %s26 = int_to_ptr.hbm [resolvable:$true] %s25
      %s27 = sshll.u32 [#allocation3], 4
      %s28 = int_to_ptr.vmem [resolvable:$true] %s27
      %30 = dma.hbm_to_vmem [thread:$0]  %s26, 128, %s28, [#allocation4]
    $region5: #{tpu_custom_call.1} parent=1 // pred_fallthru
      _
    // Predicated region
    $region6: #{tpu_custom_call.1} parent=1 // pred_check
      _
    $region7: #{tpu_custom_call.1} parent=1 // pred_check_branch
      %32 = sbr.rel (0) target = $region9
    $region8: #{tpu_custom_call.1} parent=1 // pred_region
      %34 = vsyncadd [#allocation7], 0
      %s36 = sshll.u32 %s1, 4
      %s37 = int_to_ptr.hbm [resolvable:$true] %s36
      %s38 = sshll.u32 [#allocation6], 4
      %s39 = int_to_ptr.vmem [resolvable:$true] %s38
      %41 = dma.hbm_to_vmem [thread:$0]  %s37, 128, %s39, [#allocation7]
    $region9: #{tpu_custom_call.1} parent=1 // pred_fallthru
      _
    // Predicated region
    $region10: #{tpu_custom_call.1} parent=1 // pred_check
      _
    $region11: #{tpu_custom_call.1} parent=1 // pred_check_branch
      %43 = sbr.rel (0) target = $region13
    $region12: #{tpu_custom_call.1} parent=1 // pred_region
      %45 = vsyncadd [#allocation7], 0
      %s47 = sshll.u32 %s2, 4
      %s48 = int_to_ptr.hbm [resolvable:$true] %s47
      %s49 = sshll.u32 [#allocation8], 4
      %s50 = int_to_ptr.vmem [resolvable:$true] %s49
      %52 = dma.hbm_to_vmem [thread:$0]  %s48, 128, %s50, [#allocation7]
    $region13: #{tpu_custom_call.1} parent=1 // pred_fallthru
      _
    // Predicated region
    $region14: #{tpu_custom_call.1} parent=1 // pred_check
      _
    $region15: #{tpu_custom_call.1} parent=1 // pred_check_branch
      %54 = sbr.rel (0) target = $region17
    $region16: #{tpu_custom_call.1} parent=1 // pred_region
      %56 = vsyncadd [#allocation10], 0
      %s57 = sshll.u32 %s3, 4
      %s58 = int_to_ptr.hbm [resolvable:$true] %s57
      %s59 = sshll.u32 [#allocation9], 4
      %s60 = int_to_ptr.vmem [resolvable:$true] %s59
      %65 = dma.hbm_to_vmem [thread:$0]  %s58, 512, %s60, [#allocation10], 128, 128, 8
    $region17: #{tpu_custom_call.1} parent=1 // pred_fallthru
      _
    // Predicated region
    $region18: #{tpu_custom_call.1} parent=1 // pred_check
      _
    $region19: #{tpu_custom_call.1} parent=1 // pred_check_branch
      %67 = sbr.rel (0) target = $region21
    $region20: #{tpu_custom_call.1} parent=1 // pred_region
      %69 = vsyncadd [#allocation10], 0
      %s70 = sshll.u32 %s4, 4
      %s71 = int_to_ptr.hbm [resolvable:$true] %s70
      %s72 = sshll.u32 [#allocation11], 4
      %s73 = int_to_ptr.vmem [resolvable:$true] %s72
      %78 = dma.hbm_to_vmem [thread:$0]  %s71, 512, %s73, [#allocation10], 128, 128, 8
    $region21: #{tpu_custom_call.1} parent=1 // pred_fallthru
      _
    // Predicated region
    $region22: #{tpu_custom_call.1} parent=1 // pred_check
      _
    $region23: #{tpu_custom_call.1} parent=1 // pred_check_branch
      %80 = sbr.rel (0) target = $region25
    $region24: #{tpu_custom_call.1} parent=1 // pred_region
      %82 = vsyncadd [#allocation13], 0
      %s83 = sshll.u32 %s5, 4
      %s84 = int_to_ptr.hbm [resolvable:$true] %s83
      %s85 = sshll.u32 [#allocation12], 4
      %s86 = int_to_ptr.vmem [resolvable:$true] %s85
      %91 = dma.hbm_to_vmem [thread:$0]  %s84, 512, %s86, [#allocation13], 128, 128, 8
    $region25: #{tpu_custom_call.1} parent=1 // pred_fallthru
      _
    // Predicated region
    $region26: #{tpu_custom_call.1} parent=1 // pred_check
      _
    $region27: #{tpu_custom_call.1} parent=1 // pred_check_branch
      %93 = sbr.rel (0) target = $region29
    $region28: #{tpu_custom_call.1} parent=1 // pred_region
      _
    $region29: #{tpu_custom_call.1} parent=1 // pred_fallthru
      _
    // Predicated region
    $region30: #{tpu_custom_call.1} parent=1 // pred_check
      _
    $region31: #{tpu_custom_call.1} parent=1 // pred_check_branch
      %95 = sbr.rel (0) target = $region33
    $region32: #{tpu_custom_call.1} parent=1 // pred_region
      _
    $region33: #{tpu_custom_call.1} parent=1 // pred_fallthru
      _
    // Predicated region
    $region34: #{tpu_custom_call.1} parent=1 // pred_check
      _
    $region35: #{tpu_custom_call.1} parent=1 // pred_check_branch
      %97 = sbr.rel (0) target = $region37
    $region36: #{tpu_custom_call.1} parent=1 // pred_region
      _
    $region37: #{tpu_custom_call.1} parent=1 // pred_fallthru
      _
    // Predicated region
    $region38: #{tpu_custom_call.1} parent=1 // pred_check
      _
    $region39: #{tpu_custom_call.1} parent=1 // pred_check_branch
      %99 = sbr.rel (0) target = $region41
    $region40: #{tpu_custom_call.1} parent=1 // pred_region
      %101 = dma.done [#allocation4], 128
    $region41: #{tpu_custom_call.1} parent=1 // pred_fallthru
      _
    // Predicated region
    $region42: #{tpu_custom_call.1} parent=1 // pred_check
      _
    $region43: #{tpu_custom_call.1} parent=1 // pred_check_branch
      %103 = sbr.rel (0) target = $region45
    $region44: #{tpu_custom_call.1} parent=1 // pred_region
      %105 = dma.done [#allocation7], 128
    $region45: #{tpu_custom_call.1} parent=1 // pred_fallthru
      _
    // Predicated region
    $region46: #{tpu_custom_call.1} parent=1 // pred_check
      _
    $region47: #{tpu_custom_call.1} parent=1 // pred_check_branch
      %107 = sbr.rel (0) target = $region49
    $region48: #{tpu_custom_call.1} parent=1 // pred_region
      %109 = dma.done [#allocation7], 128
    $region49: #{tpu_custom_call.1} parent=1 // pred_fallthru
      _
    // Predicated region
    $region50: #{tpu_custom_call.1} parent=1 // pred_check
      _
    $region51: #{tpu_custom_call.1} parent=1 // pred_check_branch
      %111 = sbr.rel (0) target = $region53
    $region52: #{tpu_custom_call.1} parent=1 // pred_region
      %113 = dma.done [#allocation10], 512
    $region53: #{tpu_custom_call.1} parent=1 // pred_fallthru
      _
    // Predicated region
    $region54: #{tpu_custom_call.1} parent=1 // pred_check
      _
    $region55: #{tpu_custom_call.1} parent=1 // pred_check_branch
      %115 = sbr.rel (0) target = $region57
    $region56: #{tpu_custom_call.1} parent=1 // pred_region
      %117 = dma.done [#allocation10], 512
    $region57: #{tpu_custom_call.1} parent=1 // pred_fallthru
      _
    // Predicated region
    $region58: #{tpu_custom_call.1} parent=1 // pred_check
      _
    $region59: #{tpu_custom_call.1} parent=1 // pred_check_branch
      %119 = sbr.rel (0) target = $region61
    $region60: #{tpu_custom_call.1} parent=1 // pred_region
      %121 = dma.done [#allocation13], 512
    $region61: #{tpu_custom_call.1} parent=1 // pred_fallthru
      _
    %v122 = vld [vmem:[#allocation3] sm:$0xff]
    %v123 = vld [vmem:[#allocation9] sm:$0xff]
    %v124 = vld [vmem:[#allocation9 + $0x8] sm:$0xff]
    %v125 = vld [vmem:[#allocation9 + $0x10] sm:$0xff]
    %v126 = vld [vmem:[#allocation9 + $0x18] sm:$0xff]
    %v127 = vld [vmem:[#allocation6] sm:$0xff]
    %v128 = vld [vmem:[#allocation11] sm:$0xff]
    %v129 = vld [vmem:[#allocation11 + $0x8] sm:$0xff]
    %v130 = vld [vmem:[#allocation11 + $0x10] sm:$0xff]
    %v131 = vld [vmem:[#allocation11 + $0x18] sm:$0xff]
    %vm132 = vcmask 261120
    %v134 = vsel %vm132, %v127, 0
    %136 = vmatpush.msra.mxu0 0.0
    %137 = vmatpush.msra.mxu0 0.0
    %138 = vmatpush.msra.mxu0 0.0
    %139 = vmatpush.msra.mxu0 0.0
    %140 = vmatpush.msra.mxu0 0.0
    %141 = vmatpush.msra.mxu0 0.0
    %142 = vmatpush.msra.mxu0 0.0
    %143 = vmatpush.msra.mxu0 0.0
    %144 = vmatpush.msra.mxu0 0.0
    %145 = vmatpush.msra.mxu0 0.0
    %146 = vmatpush.msra.mxu0 0.0
    %147 = vmatpush.msra.mxu0 0.0
    %v148 = vand.u32 %v131, 4294901760
    %149 = vmatpush.msra.mxu0 %v148
    %v150 = vand.u32 %v130, 4294901760
    %151 = vmatpush.msra.mxu0 %v150
    %v152 = vand.u32 %v129, 4294901760
    %153 = vmatpush.msra.mxu0 %v152
    %v154 = vand.u32 %v128, 4294901760
    %155 = vmatpush.msra.mxu0 %v154
    %v156 = vand.u32 %v134, 4294901760
    %v157 = vsub.f32 %v134, %v156
    %v158 = vand.u32 %v157, 4294901760
    %v159 = vsub.f32 %v157, %v158
    %v160 = vand.u32 %v159, 4294901760
    %161 = vmatmul.f32.gmra.mxu0 %v160
    %v162 = vpop.f32.mrf.mxu0
    %v163 = vadd.f32 0.0, %v162
    %164 = vdwg.mxu0
    %165 = vmatpush.msra.mxu0 0.0
    %166 = vmatpush.msra.mxu0 0.0
    %167 = vmatpush.msra.mxu0 0.0
    %168 = vmatpush.msra.mxu0 0.0
    %169 = vmatpush.msra.mxu0 0.0
    %170 = vmatpush.msra.mxu0 0.0
    %171 = vmatpush.msra.mxu0 0.0
    %172 = vmatpush.msra.mxu0 0.0
    %173 = vmatpush.msra.mxu0 0.0
    %174 = vmatpush.msra.mxu0 0.0
    %175 = vmatpush.msra.mxu0 0.0
    %176 = vmatpush.msra.mxu0 0.0
    %v177 = vand.u32 %v131, 4294901760
    %v178 = vsub.f32 %v131, %v177
    %v179 = vand.u32 %v178, 4294901760
    %v180 = vsub.f32 %v178, %v179
    %v181 = vand.u32 %v180, 4294901760
    %182 = vmatpush.msra.mxu0 %v181
    %v183 = vand.u32 %v130, 4294901760
    %v184 = vsub.f32 %v130, %v183
    %v185 = vand.u32 %v184, 4294901760
    %v186 = vsub.f32 %v184, %v185
    %v187 = vand.u32 %v186, 4294901760
    %188 = vmatpush.msra.mxu0 %v187
    %v189 = vand.u32 %v129, 4294901760
    %v190 = vsub.f32 %v129, %v189
    %v191 = vand.u32 %v190, 4294901760
    %v192 = vsub.f32 %v190, %v191
    %v193 = vand.u32 %v192, 4294901760
    %194 = vmatpush.msra.mxu0 %v193
    %v195 = vand.u32 %v128, 4294901760
    %v196 = vsub.f32 %v128, %v195
    %v197 = vand.u32 %v196, 4294901760
    %v198 = vsub.f32 %v196, %v197
    %v199 = vand.u32 %v198, 4294901760
    %200 = vmatpush.msra.mxu0 %v199
    %v201 = vand.u32 %v134, 4294901760
    %202 = vmatmul.f32.gmra.mxu0 %v201
    %v203 = vpop.f32.mrf.mxu0
    %v204 = vadd.f32 %v163, %v203
    %205 = vdwg.mxu0
    %206 = vmatpush.msra.mxu0 0.0
    %207 = vmatpush.msra.mxu0 0.0
    %208 = vmatpush.msra.mxu0 0.0
    %209 = vmatpush.msra.mxu0 0.0
    %210 = vmatpush.msra.mxu0 0.0
    %211 = vmatpush.msra.mxu0 0.0
    %212 = vmatpush.msra.mxu0 0.0
    %213 = vmatpush.msra.mxu0 0.0
    %214 = vmatpush.msra.mxu0 0.0
    %215 = vmatpush.msra.mxu0 0.0
    %216 = vmatpush.msra.mxu0 0.0
    %217 = vmatpush.msra.mxu0 0.0
    %v218 = vand.u32 %v131, 4294901760
    %v219 = vsub.f32 %v131, %v218
    %220 = vmatpush.msra.mxu0 %v219
    %v221 = vand.u32 %v130, 4294901760
    %v222 = vsub.f32 %v130, %v221
    %223 = vmatpush.msra.mxu0 %v222
    %v224 = vand.u32 %v129, 4294901760
    %v225 = vsub.f32 %v129, %v224
    %226 = vmatpush.msra.mxu0 %v225
    %v227 = vand.u32 %v128, 4294901760
    %v228 = vsub.f32 %v128, %v227
    %229 = vmatpush.msra.mxu0 %v228
    %v230 = vand.u32 %v134, 4294901760
    %v231 = vsub.f32 %v134, %v230
    %232 = vmatmul.f32.gmra.mxu0 %v231
    %v233 = vpop.f32.mrf.mxu0
    %v234 = vadd.f32 %v204, %v233
    %235 = vdwg.mxu0
    %236 = vmatpush.msra.mxu0 0.0
    %237 = vmatpush.msra.mxu0 0.0
    %238 = vmatpush.msra.mxu0 0.0
    %239 = vmatpush.msra.mxu0 0.0
    %240 = vmatpush.msra.mxu0 0.0
    %241 = vmatpush.msra.mxu0 0.0
    %242 = vmatpush.msra.mxu0 0.0
    %243 = vmatpush.msra.mxu0 0.0
    %244 = vmatpush.msra.mxu0 0.0
    %245 = vmatpush.msra.mxu0 0.0
    %246 = vmatpush.msra.mxu0 0.0
    %247 = vmatpush.msra.mxu0 0.0
    %v248 = vand.u32 %v131, 4294901760
    %249 = vmatpush.msra.mxu0 %v248
    %v250 = vand.u32 %v130, 4294901760
    %251 = vmatpush.msra.mxu0 %v250
    %v252 = vand.u32 %v129, 4294901760
    %253 = vmatpush.msra.mxu0 %v252
    %v254 = vand.u32 %v128, 4294901760
    %255 = vmatpush.msra.mxu0 %v254
    %v256 = vand.u32 %v134, 4294901760
    %v257 = vsub.f32 %v134, %v256
    %v258 = vand.u32 %v257, 4294901760
    %259 = vmatmul.f32.gmra.mxu0 %v258
    %v260 = vpop.f32.mrf.mxu0
    %v261 = vadd.f32 %v234, %v260
    %262 = vdwg.mxu0
    %263 = vmatpush.msra.mxu0 0.0
    %264 = vmatpush.msra.mxu0 0.0
    %265 = vmatpush.msra.mxu0 0.0
    %266 = vmatpush.msra.mxu0 0.0
    %267 = vmatpush.msra.mxu0 0.0
    %268 = vmatpush.msra.mxu0 0.0
    %269 = vmatpush.msra.mxu0 0.0
    %270 = vmatpush.msra.mxu0 0.0
    %271 = vmatpush.msra.mxu0 0.0
    %272 = vmatpush.msra.mxu0 0.0
    %273 = vmatpush.msra.mxu0 0.0
    %274 = vmatpush.msra.mxu0 0.0
    %v275 = vand.u32 %v131, 4294901760
    %v276 = vsub.f32 %v131, %v275
    %v277 = vand.u32 %v276, 4294901760
    %278 = vmatpush.msra.mxu0 %v277
    %v279 = vand.u32 %v130, 4294901760
    %v280 = vsub.f32 %v130, %v279
    %v281 = vand.u32 %v280, 4294901760
    %282 = vmatpush.msra.mxu0 %v281
    %v283 = vand.u32 %v129, 4294901760
    %v284 = vsub.f32 %v129, %v283
    %v285 = vand.u32 %v284, 4294901760
    %286 = vmatpush.msra.mxu0 %v285
    %v287 = vand.u32 %v128, 4294901760
    %v288 = vsub.f32 %v128, %v287
    %v289 = vand.u32 %v288, 4294901760
    %290 = vmatpush.msra.mxu0 %v289
    %v291 = vand.u32 %v134, 4294901760
    %292 = vmatmul.f32.gmra.mxu0 %v291
    %v293 = vpop.f32.mrf.mxu0
    %v294 = vadd.f32 %v261, %v293
    %295 = vdwg.mxu0
    %296 = vmatpush.msra.mxu0 0.0
    %297 = vmatpush.msra.mxu0 0.0
    %298 = vmatpush.msra.mxu0 0.0
    %299 = vmatpush.msra.mxu0 0.0
    %300 = vmatpush.msra.mxu0 0.0
    %301 = vmatpush.msra.mxu0 0.0
    %302 = vmatpush.msra.mxu0 0.0
    %303 = vmatpush.msra.mxu0 0.0
    %304 = vmatpush.msra.mxu0 0.0
    %305 = vmatpush.msra.mxu0 0.0
    %306 = vmatpush.msra.mxu0 0.0
    %307 = vmatpush.msra.mxu0 0.0
    %v308 = vand.u32 %v131, 4294901760
    %309 = vmatpush.msra.mxu0 %v308
    %v310 = vand.u32 %v130, 4294901760
    %311 = vmatpush.msra.mxu0 %v310
    %v312 = vand.u32 %v129, 4294901760
    %313 = vmatpush.msra.mxu0 %v312
    %v314 = vand.u32 %v128, 4294901760
    %315 = vmatpush.msra.mxu0 %v314
    %v316 = vand.u32 %v134, 4294901760
    %317 = vmatmul.f32.gmra.mxu0 %v316
    %v318 = vpop.f32.mrf.mxu0
    %v319 = vadd.f32 %v294, %v318
    %320 = vdwg.mxu0
    %v322 = vsel %vm132, %v122, 0
    %324 = vmatpush.msra.mxu0 0.0
    %325 = vmatpush.msra.mxu0 0.0
    %326 = vmatpush.msra.mxu0 0.0
    %327 = vmatpush.msra.mxu0 0.0
    %328 = vmatpush.msra.mxu0 0.0
    %329 = vmatpush.msra.mxu0 0.0
    %330 = vmatpush.msra.mxu0 0.0
    %331 = vmatpush.msra.mxu0 0.0
    %332 = vmatpush.msra.mxu0 0.0
    %333 = vmatpush.msra.mxu0 0.0
    %334 = vmatpush.msra.mxu0 0.0
    %335 = vmatpush.msra.mxu0 0.0
    %v336 = vand.u32 %v126, 4294901760
    %337 = vmatpush.msra.mxu0 %v336
    %v338 = vand.u32 %v125, 4294901760
    %339 = vmatpush.msra.mxu0 %v338
    %v340 = vand.u32 %v124, 4294901760
    %341 = vmatpush.msra.mxu0 %v340
    %v342 = vand.u32 %v123, 4294901760
    %343 = vmatpush.msra.mxu0 %v342
    %v344 = vand.u32 %v322, 4294901760
    %v345 = vsub.f32 %v322, %v344
    %v346 = vand.u32 %v345, 4294901760
    %v347 = vsub.f32 %v345, %v346
    %v348 = vand.u32 %v347, 4294901760
    %349 = vmatmul.f32.gmra.mxu0 %v348
    %v350 = vpop.f32.mrf.mxu0
    %v351 = vadd.f32 %v319, %v350
    %352 = vdwg.mxu0
    %353 = vmatpush.msra.mxu0 0.0
    %354 = vmatpush.msra.mxu0 0.0
    %355 = vmatpush.msra.mxu0 0.0
    %356 = vmatpush.msra.mxu0 0.0
    %357 = vmatpush.msra.mxu0 0.0
    %358 = vmatpush.msra.mxu0 0.0
    %359 = vmatpush.msra.mxu0 0.0
    %360 = vmatpush.msra.mxu0 0.0
    %361 = vmatpush.msra.mxu0 0.0
    %362 = vmatpush.msra.mxu0 0.0
    %363 = vmatpush.msra.mxu0 0.0
    %364 = vmatpush.msra.mxu0 0.0
    %v365 = vand.u32 %v126, 4294901760
    %v366 = vsub.f32 %v126, %v365
    %v367 = vand.u32 %v366, 4294901760
    %v368 = vsub.f32 %v366, %v367
    %v369 = vand.u32 %v368, 4294901760
    %370 = vmatpush.msra.mxu0 %v369
    %v371 = vand.u32 %v125, 4294901760
    %v372 = vsub.f32 %v125, %v371
    %v373 = vand.u32 %v372, 4294901760
    %v374 = vsub.f32 %v372, %v373
    %v375 = vand.u32 %v374, 4294901760
    %376 = vmatpush.msra.mxu0 %v375
    %v377 = vand.u32 %v124, 4294901760
    %v378 = vsub.f32 %v124, %v377
    %v379 = vand.u32 %v378, 4294901760
    %v380 = vsub.f32 %v378, %v379
    %v381 = vand.u32 %v380, 4294901760
    %382 = vmatpush.msra.mxu0 %v381
    %v383 = vand.u32 %v123, 4294901760
    %v384 = vsub.f32 %v123, %v383
    %v385 = vand.u32 %v384, 4294901760
    %v386 = vsub.f32 %v384, %v385
    %v387 = vand.u32 %v386, 4294901760
    %388 = vmatpush.msra.mxu0 %v387
    %v389 = vand.u32 %v322, 4294901760
    %390 = vmatmul.f32.gmra.mxu0 %v389
    %v391 = vpop.f32.mrf.mxu0
    %v392 = vadd.f32 %v351, %v391
    %393 = vdwg.mxu0
    %394 = vmatpush.msra.mxu0 0.0
    %395 = vmatpush.msra.mxu0 0.0
    %396 = vmatpush.msra.mxu0 0.0
    %397 = vmatpush.msra.mxu0 0.0
    %398 = vmatpush.msra.mxu0 0.0
    %399 = vmatpush.msra.mxu0 0.0
    %400 = vmatpush.msra.mxu0 0.0
    %401 = vmatpush.msra.mxu0 0.0
    %402 = vmatpush.msra.mxu0 0.0
    %403 = vmatpush.msra.mxu0 0.0
    %404 = vmatpush.msra.mxu0 0.0
    %405 = vmatpush.msra.mxu0 0.0
    %v406 = vand.u32 %v126, 4294901760
    %v407 = vsub.f32 %v126, %v406
    %408 = vmatpush.msra.mxu0 %v407
    %v409 = vand.u32 %v125, 4294901760
    %v410 = vsub.f32 %v125, %v409
    %411 = vmatpush.msra.mxu0 %v410
    %v412 = vand.u32 %v124, 4294901760
    %v413 = vsub.f32 %v124, %v412
    %414 = vmatpush.msra.mxu0 %v413
    %v415 = vand.u32 %v123, 4294901760
    %v416 = vsub.f32 %v123, %v415
    %417 = vmatpush.msra.mxu0 %v416
    %v418 = vand.u32 %v322, 4294901760
    %v419 = vsub.f32 %v322, %v418
    %420 = vmatmul.f32.gmra.mxu0 %v419
    %v421 = vpop.f32.mrf.mxu0
    %v422 = vadd.f32 %v392, %v421
    %423 = vdwg.mxu0
    %424 = vmatpush.msra.mxu0 0.0
    %425 = vmatpush.msra.mxu0 0.0
    %426 = vmatpush.msra.mxu0 0.0
    %427 = vmatpush.msra.mxu0 0.0
    %428 = vmatpush.msra.mxu0 0.0
    %429 = vmatpush.msra.mxu0 0.0
    %430 = vmatpush.msra.mxu0 0.0
    %431 = vmatpush.msra.mxu0 0.0
    %432 = vmatpush.msra.mxu0 0.0
    %433 = vmatpush.msra.mxu0 0.0
    %434 = vmatpush.msra.mxu0 0.0
    %435 = vmatpush.msra.mxu0 0.0
    %v436 = vand.u32 %v126, 4294901760
    %437 = vmatpush.msra.mxu0 %v436
    %v438 = vand.u32 %v125, 4294901760
    %439 = vmatpush.msra.mxu0 %v438
    %v440 = vand.u32 %v124, 4294901760
    %441 = vmatpush.msra.mxu0 %v440
    %v442 = vand.u32 %v123, 4294901760
    %443 = vmatpush.msra.mxu0 %v442
    %v444 = vand.u32 %v322, 4294901760
    %v445 = vsub.f32 %v322, %v444
    %v446 = vand.u32 %v445, 4294901760
    %447 = vmatmul.f32.gmra.mxu0 %v446
    %v448 = vpop.f32.mrf.mxu0
    %v449 = vadd.f32 %v422, %v448
    %450 = vdwg.mxu0
    %451 = vmatpush.msra.mxu0 0.0
    %452 = vmatpush.msra.mxu0 0.0
    %453 = vmatpush.msra.mxu0 0.0
    %454 = vmatpush.msra.mxu0 0.0
    %455 = vmatpush.msra.mxu0 0.0
    %456 = vmatpush.msra.mxu0 0.0
    %457 = vmatpush.msra.mxu0 0.0
    %458 = vmatpush.msra.mxu0 0.0
    %459 = vmatpush.msra.mxu0 0.0
    %460 = vmatpush.msra.mxu0 0.0
    %461 = vmatpush.msra.mxu0 0.0
    %462 = vmatpush.msra.mxu0 0.0
    %v463 = vand.u32 %v126, 4294901760
    %v464 = vsub.f32 %v126, %v463
    %v465 = vand.u32 %v464, 4294901760
    %466 = vmatpush.msra.mxu0 %v465
    %v467 = vand.u32 %v125, 4294901760
    %v468 = vsub.f32 %v125, %v467
    %v469 = vand.u32 %v468, 4294901760
    %470 = vmatpush.msra.mxu0 %v469
    %v471 = vand.u32 %v124, 4294901760
    %v472 = vsub.f32 %v124, %v471
    %v473 = vand.u32 %v472, 4294901760
    %474 = vmatpush.msra.mxu0 %v473
    %v475 = vand.u32 %v123, 4294901760
    %v476 = vsub.f32 %v123, %v475
    %v477 = vand.u32 %v476, 4294901760
    %478 = vmatpush.msra.mxu0 %v477
    %v479 = vand.u32 %v322, 4294901760
    %480 = vmatmul.f32.gmra.mxu0 %v479
    %v481 = vpop.f32.mrf.mxu0
    %v482 = vadd.f32 %v449, %v481
    %483 = vdwg.mxu0
    %484 = vmatpush.msra.mxu0 0.0
    %485 = vmatpush.msra.mxu0 0.0
    %486 = vmatpush.msra.mxu0 0.0
    %487 = vmatpush.msra.mxu0 0.0
    %488 = vmatpush.msra.mxu0 0.0
    %489 = vmatpush.msra.mxu0 0.0
    %490 = vmatpush.msra.mxu0 0.0
    %491 = vmatpush.msra.mxu0 0.0
    %492 = vmatpush.msra.mxu0 0.0
    %493 = vmatpush.msra.mxu0 0.0
    %494 = vmatpush.msra.mxu0 0.0
    %495 = vmatpush.msra.mxu0 0.0
    %v496 = vand.u32 %v126, 4294901760
    %497 = vmatpush.msra.mxu0 %v496
    %v498 = vand.u32 %v125, 4294901760
    %499 = vmatpush.msra.mxu0 %v498
    %v500 = vand.u32 %v124, 4294901760
    %501 = vmatpush.msra.mxu0 %v500
    %v502 = vand.u32 %v123, 4294901760
    %503 = vmatpush.msra.mxu0 %v502
    %v504 = vand.u32 %v322, 4294901760
    %505 = vmatmul.f32.gmra.mxu0 %v504
    %v506 = vpop.f32.mrf.mxu0
    %v507 = vadd.f32 %v482, %v506
    %508 = vdwg.mxu0
    %v509 = vld [vmem:[#allocation8] sm:$0xff]
    %v510 = vld [vmem:[#allocation12] sm:$0xff]
    %v511 = vld [vmem:[#allocation12 + $0x8] sm:$0xff]
    %v512 = vld [vmem:[#allocation12 + $0x10] sm:$0xff]
    %v513 = vld [vmem:[#allocation12 + $0x18] sm:$0xff]
    %v515 = vsel %vm132, %v509, 0
    %517 = vmatpush.msra.mxu0 0.0
    %518 = vmatpush.msra.mxu0 0.0
    %519 = vmatpush.msra.mxu0 0.0
    %520 = vmatpush.msra.mxu0 0.0
    %521 = vmatpush.msra.mxu0 0.0
    %522 = vmatpush.msra.mxu0 0.0
    %523 = vmatpush.msra.mxu0 0.0
    %524 = vmatpush.msra.mxu0 0.0
    %525 = vmatpush.msra.mxu0 0.0
    %526 = vmatpush.msra.mxu0 0.0
    %527 = vmatpush.msra.mxu0 0.0
    %528 = vmatpush.msra.mxu0 0.0
    %v529 = vand.u32 %v513, 4294901760
    %530 = vmatpush.msra.mxu0 %v529
    %v531 = vand.u32 %v512, 4294901760
    %532 = vmatpush.msra.mxu0 %v531
    %v533 = vand.u32 %v511, 4294901760
    %534 = vmatpush.msra.mxu0 %v533
    %v535 = vand.u32 %v510, 4294901760
    %536 = vmatpush.msra.mxu0 %v535
    %v537 = vand.u32 %v515, 4294901760
    %v538 = vsub.f32 %v515, %v537
    %v539 = vand.u32 %v538, 4294901760
    %v540 = vsub.f32 %v538, %v539
    %v541 = vand.u32 %v540, 4294901760
    %542 = vmatmul.f32.gmra.mxu0 %v541
    %v543 = vpop.f32.mrf.mxu0
    %v544 = vadd.f32 0.0, %v543
    %545 = vdwg.mxu0
    %546 = vmatpush.msra.mxu0 0.0
    %547 = vmatpush.msra.mxu0 0.0
    %548 = vmatpush.msra.mxu0 0.0
    %549 = vmatpush.msra.mxu0 0.0
    %550 = vmatpush.msra.mxu0 0.0
    %551 = vmatpush.msra.mxu0 0.0
    %552 = vmatpush.msra.mxu0 0.0
    %553 = vmatpush.msra.mxu0 0.0
    %554 = vmatpush.msra.mxu0 0.0
    %555 = vmatpush.msra.mxu0 0.0
    %556 = vmatpush.msra.mxu0 0.0
    %557 = vmatpush.msra.mxu0 0.0
    %v558 = vand.u32 %v513, 4294901760
    %v559 = vsub.f32 %v513, %v558
    %v560 = vand.u32 %v559, 4294901760
    %v561 = vsub.f32 %v559, %v560
    %v562 = vand.u32 %v561, 4294901760
    %563 = vmatpush.msra.mxu0 %v562
    %v564 = vand.u32 %v512, 4294901760
    %v565 = vsub.f32 %v512, %v564
    %v566 = vand.u32 %v565, 4294901760
    %v567 = vsub.f32 %v565, %v566
    %v568 = vand.u32 %v567, 4294901760
    %569 = vmatpush.msra.mxu0 %v568
    %v570 = vand.u32 %v511, 4294901760
    %v571 = vsub.f32 %v511, %v570
    %v572 = vand.u32 %v571, 4294901760
    %v573 = vsub.f32 %v571, %v572
    %v574 = vand.u32 %v573, 4294901760
    %575 = vmatpush.msra.mxu0 %v574
    %v576 = vand.u32 %v510, 4294901760
    %v577 = vsub.f32 %v510, %v576
    %v578 = vand.u32 %v577, 4294901760
    %v579 = vsub.f32 %v577, %v578
    %v580 = vand.u32 %v579, 4294901760
    %581 = vmatpush.msra.mxu0 %v580
    %v582 = vand.u32 %v515, 4294901760
    %583 = vmatmul.f32.gmra.mxu0 %v582
    %v584 = vpop.f32.mrf.mxu0
    %v585 = vadd.f32 %v544, %v584
    %586 = vdwg.mxu0
    %587 = vmatpush.msra.mxu0 0.0
    %588 = vmatpush.msra.mxu0 0.0
    %589 = vmatpush.msra.mxu0 0.0
    %590 = vmatpush.msra.mxu0 0.0
    %591 = vmatpush.msra.mxu0 0.0
    %592 = vmatpush.msra.mxu0 0.0
    %593 = vmatpush.msra.mxu0 0.0
    %594 = vmatpush.msra.mxu0 0.0
    %595 = vmatpush.msra.mxu0 0.0
    %596 = vmatpush.msra.mxu0 0.0
    %597 = vmatpush.msra.mxu0 0.0
    %598 = vmatpush.msra.mxu0 0.0
    %v599 = vand.u32 %v513, 4294901760
    %v600 = vsub.f32 %v513, %v599
    %601 = vmatpush.msra.mxu0 %v600
    %v602 = vand.u32 %v512, 4294901760
    %v603 = vsub.f32 %v512, %v602
    %604 = vmatpush.msra.mxu0 %v603
    %v605 = vand.u32 %v511, 4294901760
    %v606 = vsub.f32 %v511, %v605
    %607 = vmatpush.msra.mxu0 %v606
    %v608 = vand.u32 %v510, 4294901760
    %v609 = vsub.f32 %v510, %v608
    %610 = vmatpush.msra.mxu0 %v609
    %v611 = vand.u32 %v515, 4294901760
    %v612 = vsub.f32 %v515, %v611
    %613 = vmatmul.f32.gmra.mxu0 %v612
    %v614 = vpop.f32.mrf.mxu0
    %v615 = vadd.f32 %v585, %v614
    %616 = vdwg.mxu0
    %617 = vmatpush.msra.mxu0 0.0
    %618 = vmatpush.msra.mxu0 0.0
    %619 = vmatpush.msra.mxu0 0.0
    %620 = vmatpush.msra.mxu0 0.0
    %621 = vmatpush.msra.mxu0 0.0
    %622 = vmatpush.msra.mxu0 0.0
    %623 = vmatpush.msra.mxu0 0.0
    %624 = vmatpush.msra.mxu0 0.0
    %625 = vmatpush.msra.mxu0 0.0
    %626 = vmatpush.msra.mxu0 0.0
    %627 = vmatpush.msra.mxu0 0.0
    %628 = vmatpush.msra.mxu0 0.0
    %v629 = vand.u32 %v513, 4294901760
    %630 = vmatpush.msra.mxu0 %v629
    %v631 = vand.u32 %v512, 4294901760
    %632 = vmatpush.msra.mxu0 %v631
    %v633 = vand.u32 %v511, 4294901760
    %634 = vmatpush.msra.mxu0 %v633
    %v635 = vand.u32 %v510, 4294901760
    %636 = vmatpush.msra.mxu0 %v635
    %v637 = vand.u32 %v515, 4294901760
    %v638 = vsub.f32 %v515, %v637
    %v639 = vand.u32 %v638, 4294901760
    %640 = vmatmul.f32.gmra.mxu0 %v639
    %v641 = vpop.f32.mrf.mxu0
    %v642 = vadd.f32 %v615, %v641
    %643 = vdwg.mxu0
    %644 = vmatpush.msra.mxu0 0.0
    %645 = vmatpush.msra.mxu0 0.0
    %646 = vmatpush.msra.mxu0 0.0
    %647 = vmatpush.msra.mxu0 0.0
    %648 = vmatpush.msra.mxu0 0.0
    %649 = vmatpush.msra.mxu0 0.0
    %650 = vmatpush.msra.mxu0 0.0
    %651 = vmatpush.msra.mxu0 0.0
    %652 = vmatpush.msra.mxu0 0.0
    %653 = vmatpush.msra.mxu0 0.0
    %654 = vmatpush.msra.mxu0 0.0
    %655 = vmatpush.msra.mxu0 0.0
    %v656 = vand.u32 %v513, 4294901760
    %v657 = vsub.f32 %v513, %v656
    %v658 = vand.u32 %v657, 4294901760
    %659 = vmatpush.msra.mxu0 %v658
    %v660 = vand.u32 %v512, 4294901760
    %v661 = vsub.f32 %v512, %v660
    %v662 = vand.u32 %v661, 4294901760
    %663 = vmatpush.msra.mxu0 %v662
    %v664 = vand.u32 %v511, 4294901760
    %v665 = vsub.f32 %v511, %v664
    %v666 = vand.u32 %v665, 4294901760
    %667 = vmatpush.msra.mxu0 %v666
    %v668 = vand.u32 %v510, 4294901760
    %v669 = vsub.f32 %v510, %v668
    %v670 = vand.u32 %v669, 4294901760
    %671 = vmatpush.msra.mxu0 %v670
    %v672 = vand.u32 %v515, 4294901760
    %673 = vmatmul.f32.gmra.mxu0 %v672
    %v674 = vpop.f32.mrf.mxu0
    %v675 = vadd.f32 %v642, %v674
    %676 = vdwg.mxu0
    %677 = vmatpush.msra.mxu0 0.0
    %678 = vmatpush.msra.mxu0 0.0
    %679 = vmatpush.msra.mxu0 0.0
    %680 = vmatpush.msra.mxu0 0.0
    %681 = vmatpush.msra.mxu0 0.0
    %682 = vmatpush.msra.mxu0 0.0
    %683 = vmatpush.msra.mxu0 0.0
    %684 = vmatpush.msra.mxu0 0.0
    %685 = vmatpush.msra.mxu0 0.0
    %686 = vmatpush.msra.mxu0 0.0
    %687 = vmatpush.msra.mxu0 0.0
    %688 = vmatpush.msra.mxu0 0.0
    %v689 = vand.u32 %v513, 4294901760
    %690 = vmatpush.msra.mxu0 %v689
    %v691 = vand.u32 %v512, 4294901760
    %692 = vmatpush.msra.mxu0 %v691
    %v693 = vand.u32 %v511, 4294901760
    %694 = vmatpush.msra.mxu0 %v693
    %v695 = vand.u32 %v510, 4294901760
    %696 = vmatpush.msra.mxu0 %v695
    %v697 = vand.u32 %v515, 4294901760
    %698 = vmatmul.f32.gmra.mxu0 %v697
    %v699 = vpop.f32.mrf.mxu0
    %v700 = vadd.f32 %v675, %v699
    %701 = vdwg.mxu0
    %v702 = vadd.f32 %v507, %v700
    %v703 = vld [vmem:[%s6] sm:$0x1]
    %v705 = vperm.slane %v703, 0
    %v707 = vadd.f32 %v702, %v705
    %v708 = vmax.f32 %v707, 0.0
    %v709 = vld [vmem:[%s7] sm:$0x1]
    %v711 = vperm.slane %v709, 0
    %v713 = vmul.f32 %v708, %v711
    %714 = vadd.xlane.f32.xlu0 %v713
    %v715 = vpop.xlane.xlu0 %714
    %s716 = sld [smem:[#allocation2]]
    %v717 = vstv %s716
    %v718 = vadd.f32 %v715, %v717
    %v720 = vlaneseq
    %v721 = vand.u32 %v720, 127
    %v722 = vperm.slane %v718, %v721
    %vm724 = vcmask 57344
    %725 = vst.msk [vmem:[#allocation14] sm:$0x1] %vm724, %v722
    // Predicated region
    $region62: #{tpu_custom_call.1} parent=1 // pred_check
      _
    $region63: #{tpu_custom_call.1} parent=1 // pred_check_branch
      %727 = sbr.rel (0) target = $region65
    $region64: #{tpu_custom_call.1} parent=1 // pred_region
      %729 = vsyncadd [#allocation5], 0
      %s731 = sshll.u32 [#allocation14], 4
      %s732 = int_to_ptr.vmem [resolvable:$true] %s731
      %s733 = sshll.u32 %s9, 4
      %s734 = int_to_ptr.hbm [resolvable:$true] %s733
      %736 = dma.vmem_to_hbm [thread:$0]  %s732, 16, %s734, [#allocation5]
    $region65: #{tpu_custom_call.1} parent=1 // pred_fallthru
      _
    // Predicated region
    $region66: #{tpu_custom_call.1} parent=1 // pred_check
      _
    $region67: #{tpu_custom_call.1} parent=1 // pred_check_branch
      %738 = sbr.rel (0) target = $region69
    $region68: #{tpu_custom_call.1} parent=1 // pred_region
      %740 = dma.done [#allocation5], 16
    $region69: #{tpu_custom_call.1} parent=1 // pred_fallthru
      _
    %741 = vsyncpa [#allocation4], 1
    %742 = vsyncpa [#allocation7], 1
    %743 = vsyncpa [#allocation10], 1
    %744 = vsyncpa [#allocation13], 1
    %745 = vsyncpa [#allocation5], 1

</llo_original>
